<compile_context>
chip_gen: v6e
topology: v6e:2x2x1
jax: 0.10.0
libtpu: 0.0.40
codegen_flags: <defaults>
</compile_context>

<pallas_src>
import functools
import math

import jax
import jax.numpy as jnp
from jax.experimental import pallas as pl
from jax.experimental.pallas import tpu as pltpu

# ----------------------------- small config ---------------------------------
SEQ_LEN = 16
BATCH = 2
EMBED_DIM = 128          # lane-dense (multiple of 128)
NUM_HEADS = 4            # head_dim = 32, conv groups = 4
LN_EPS = 1e-5            # PyTorch LayerNorm default
NEG_INF = -1e30          # additive mask value for cross-batch attention pairs


# ----------------------------- fused Pallas kernel --------------------------
def _hybrid_mhsa_kernel(x_ref, wq_ref, wk_ref, wv_ref, bq_ref, bv_ref,
                        wo_ref, bo_ref, wc_ref, bc_ref, g_ref, beta_ref,
                        amask_ref, pmask_ref, nmask_ref, o_ref, *,
                        num_heads, batch):
    x = x_ref[...]                                    # (R, D) f32, rows = (seq, batch)
    r, d = x.shape
    dh = d // num_heads
    xb = x.astype(jnp.bfloat16)                       # MXU operand (weights are bf16)

    # ---- Q/K/V: three lane-dense (R,D)@(D,D) matmuls (head-major columns) ----
    # 1/sqrt(dh) is folded into wq/bq; the key bias is dropped (softmax-invariant).
    q = jnp.dot(xb, wq_ref[...], preferred_element_type=jnp.float32) + bq_ref[...]
    k = jnp.dot(xb, wk_ref[...], preferred_element_type=jnp.float32)
    v = jnp.dot(xb, wv_ref[...], preferred_element_type=jnp.float32) + bv_ref[...]

    # ---- per-head attention with the out-projection accumulated (no concat) ----
    # All B*S rows attend jointly; the precomputed additive mask (-1e30 on
    # cross-batch pairs) makes this exactly per-batch softmax while keeping
    # every matmul 2-D with the full 32-row M dimension.
    amask = amask_ref[...]                            # (R, R) f32: 0 / -1e30
    attn = jnp.zeros((r, d), jnp.float32)
    for h in range(num_heads):                        # static H=4 -> unrolled
        lo = h * dh
        q_h = q[:, lo:lo + dh]                        # (R, dh) lane slices (XLU, idle)
        k_h = k[:, lo:lo + dh]
        v_h = v[:, lo:lo + dh]
        logits = jnp.einsum('re,te->rt', q_h, k_h,
                            preferred_element_type=jnp.float32) + amask
        logits = logits - jnp.max(logits, axis=-1, keepdims=True)
        p = jnp.exp(logits)
        p = p / jnp.sum(p, axis=-1, keepdims=True)    # exact normalization (f32)
        ctx = jnp.dot(p, v_h, preferred_element_type=jnp.float32)      # (R, dh)
        attn = attn + jnp.dot(ctx.astype(jnp.bfloat16), wo_ref[h],
                              preferred_element_type=jnp.float32)       # (R, D)
    attn = attn + bo_ref[...]

    # ---- grouped Conv1d(k=3, pad=1, groups=H): three accumulated tap matmuls ----
    # Neighbours via sublane roll over (seq, batch)-ordered rows; wrapped /
    # cross-batch rows are exactly the zero-pad rows (s==0 / s==S-1) and are
    # zeroed by the precomputed {0,1} column masks.
    prev = pltpu.roll(x, shift=batch, axis=0) * pmask_ref[...]          # row <- row-B
    nxt = pltpu.roll(x, shift=r - batch, axis=0) * nmask_ref[...]       # row <- row+B
    conv = jnp.dot(prev.astype(jnp.bfloat16), wc_ref[0],
                   preferred_element_type=jnp.float32)
    conv = conv + jnp.dot(xb, wc_ref[1], preferred_element_type=jnp.float32)
    conv = conv + jnp.dot(nxt.astype(jnp.bfloat16), wc_ref[2],
                          preferred_element_type=jnp.float32)
    conv = conv + bc_ref[...]

    # ---- add + LayerNorm (f32 statistics) ------------------------------------
    y = attn + conv
    mu = jnp.mean(y, axis=-1, keepdims=True)
    yc = y - mu
    var = jnp.mean(yc * yc, axis=-1, keepdims=True)
    o_ref[...] = yc * jax.lax.rsqrt(var + LN_EPS) * g_ref[...] + beta_ref[...]


def hybrid_mhsa_pallas(x_sbd, kp, num_heads):
    """x_sbd: (S, B, D), the PyTorch layout. Returns (S, B, D)."""
    s, b, d = x_sbd.shape
    x2 = x_sbd.reshape(s * b, d)          # free row-major reshape (no transpose)
    out2 = pl.pallas_call(
        functools.partial(_hybrid_mhsa_kernel, num_heads=num_heads, batch=b),
        out_shape=jax.ShapeDtypeStruct((s * b, d), jnp.float32),
    )(x2, kp['wq'], kp['wk'], kp['wv'], kp['bq'], kp['bv'], kp['wo'], kp['bo'],
      kp['wc'], kp['bc'], kp['ln_g'], kp['ln_b'],
      kp['attn_mask'], kp['prev_mask'], kp['next_mask'])
    return out2.reshape(s, b, d)          # free reshape back to (S, B, D)


# ----------------------------- parameters -----------------------------------
def init_params(key, dim, num_heads):
    """PyTorch-layout parameters (as the nn.Module stores them)."""
    ks = jax.random.split(key, 8)
    dg = dim // num_heads

    def rnd(k, shape, scale=0.05):
        return (scale * jax.random.normal(k, shape)).astype(jnp.float32)

    return {
        'in_proj_weight': rnd(ks[0], (3 * dim, dim)),        # MHA in_proj (3D, D)
        'in_proj_bias':   rnd(ks[1], (3 * dim,), 0.02),
        'out_proj_weight': rnd(ks[2], (dim, dim)),           # MHA out_proj (D, D)
        'out_proj_bias':   rnd(ks[3], (dim,), 0.02),
        'conv_weight': rnd(ks[4], (dim, dg, 3), 0.1),        # grouped Conv1d (D, D/H, 3)
        'conv_bias':   rnd(ks[5], (dim,), 0.02),
        'ln_weight': 1.0 + rnd(ks[6], (dim,), 0.05),
        'ln_bias':   rnd(ks[7], (dim,), 0.02),
    }


def pack_params(p, dim, num_heads, seq_len, batch):
    """One-time repack into kernel-friendly layouts (outside the hot path)."""
    dh = dim // num_heads
    scale = 1.0 / math.sqrt(dh)
    w3, b3 = p['in_proj_weight'], p['in_proj_bias']
    wq, wk, wv = w3[:dim], w3[dim:2 * dim], w3[2 * dim:]
    bq, bv = b3[:dim], b3[2 * dim:]        # key bias dropped (softmax-invariant)

    # grouped conv -> three dense block-diagonal per-tap (D, D) matrices
    dg = dim // num_heads
    eye = jnp.eye(num_heads, dtype=jnp.float32)
    wg_h = p['conv_weight'].reshape(num_heads, dg, dg, 3)    # [h, oc_l, ic_l, k]
    dense = jnp.einsum('hH,Hoik->khiHo', eye, wg_h)          # (3, H, dg, H, dg)
    wc = dense.reshape(3, dim, dim)                          # tap k: [in, out]

    # out-projection pre-split per head: attn = sum_h ctx_h @ wo[h]
    wo_heads = jnp.transpose(p['out_proj_weight']).reshape(num_heads, dh, dim)

    # precomputed masks (review item: no in-kernel iota/where)
    r = seq_len * batch
    rows = jnp.arange(r)
    same_batch = (rows[:, None] % batch) == (rows[None, :] % batch)
    attn_mask = jnp.where(same_batch, 0.0, NEG_INF).astype(jnp.float32)   # (R, R)
    prev_mask = (rows >= batch).astype(jnp.float32).reshape(r, 1)         # s == 0 rows -> 0
    next_mask = (rows < r - batch).astype(jnp.float32).reshape(r, 1)      # s == S-1 rows -> 0

    bf = jnp.bfloat16
    return {
        'wq': (jnp.transpose(wq) * scale).astype(bf),        # (D, D) head-major columns
        'wk': jnp.transpose(wk).astype(bf),
        'wv': jnp.transpose(wv).astype(bf),
        'bq': (bq * scale).reshape(1, dim),                  # f32 biases
        'bv': bv.reshape(1, dim),
        'wo': wo_heads.astype(bf),                           # (H, dh, D)
        'bo': p['out_proj_bias'].reshape(1, dim),
        'wc': wc.astype(bf),                                 # (3, D, D) per-tap
        'bc': p['conv_bias'].reshape(1, dim),
        'ln_g': p['ln_weight'].reshape(1, dim),
        'ln_b': p['ln_bias'].reshape(1, dim),
        'attn_mask': attn_mask,
        'prev_mask': prev_mask,
        'next_mask': next_mask,
    }


# ----------------------------- pure-JAX reference (for self-check) ----------
def hybrid_mhsa_reference(x_sbd, p, num_heads):
    s, b, d = x_sbd.shape
    dh = d // num_heads
    hi = jax.lax.Precision.HIGHEST

    qkv = jnp.einsum('sbd,ed->sbe', x_sbd, p['in_proj_weight'],
                     precision=hi) + p['in_proj_bias']
    q, k, v = jnp.split(qkv, 3, axis=-1)

    def split_heads(t):                                   # (S,B,D) -> (B,H,S,dh)
        return jnp.transpose(t.reshape(s, b, num_heads, dh), (1, 2, 0, 3))

    q, k, v = split_heads(q), split_heads(k), split_heads(v)
    logits = jnp.einsum('bhse,bhte->bhst', q, k, precision=hi) / math.sqrt(dh)
    aw = jax.nn.softmax(logits, axis=-1)
    ctx = jnp.einsum('bhst,bhte->bhse', aw, v, precision=hi)
    ctx = jnp.transpose(ctx, (2, 0, 1, 3)).reshape(s, b, d)
    attn = jnp.einsum('sbd,od->sbo', ctx, p['out_proj_weight'],
                      precision=hi) + p['out_proj_bias']

    xc = jnp.transpose(x_sbd, (1, 2, 0))                  # (B, D, S)
    conv = jax.lax.conv_general_dilated(
        xc, p['conv_weight'], window_strides=(1,), padding=((1, 1),),
        dimension_numbers=('NCH', 'OIH', 'NCH'),
        feature_group_count=num_heads, precision=hi)
    conv = conv + p['conv_bias'][None, :, None]
    conv = jnp.transpose(conv, (2, 0, 1))                 # (S, B, D)

    y = attn + conv
    mu = jnp.mean(y, axis=-1, keepdims=True)
    var = jnp.mean((y - mu) ** 2, axis=-1, keepdims=True)
    return (y - mu) / jnp.sqrt(var + LN_EPS) * p['ln_weight'] + p['ln_bias']


# ----------------------------- main ------------------------------------------
if __name__ == "__main__":
    key = jax.random.PRNGKey(0)
    pkey, xkey = jax.random.split(key)

    params = init_params(pkey, EMBED_DIM, NUM_HEADS)
    kparams = pack_params(params, EMBED_DIM, NUM_HEADS, SEQ_LEN, BATCH)

    # x in the PyTorch layout (S, B, D) — batch_first=False MultiheadAttention.
    x = jax.random.normal(xkey, (SEQ_LEN, BATCH, EMBED_DIM), dtype=jnp.float32)

    forward = jax.jit(lambda xx, kp: hybrid_mhsa_pallas(xx, kp, NUM_HEADS))
    out = jax.block_until_ready(forward(x, kparams))
    assert out.shape == (SEQ_LEN, BATCH, EMBED_DIM)

    ref = jax.block_until_ready(hybrid_mhsa_reference(x, params, NUM_HEADS))
    err = float(jnp.max(jnp.abs(out - ref)))
    # bound accommodates bf16 matmul operands/weights (expected max|diff| ~1e-2
    # vs the f32 reference); softmax/LayerNorm statistics are exact f32.
    assert err < 3e-2, f"kernel/reference mismatch: max|diff|={err}"

    print("KERNEL_OK")
</pallas_src>

<mosaic_0001>
module attributes {stable_mosaic.version = 11 : i64} {
  func.func @_hybrid_mhsa_kernel(%arg0: memref<32x128xf32, #tpu.memory_space<vmem>>, %arg1: memref<128x128xbf16, #tpu.memory_space<vmem>>, %arg2: memref<128x128xbf16, #tpu.memory_space<vmem>>, %arg3: memref<128x128xbf16, #tpu.memory_space<vmem>>, %arg4: memref<1x128xf32, #tpu.memory_space<vmem>>, %arg5: memref<1x128xf32, #tpu.memory_space<vmem>>, %arg6: memref<4x32x128xbf16, #tpu.memory_space<vmem>>, %arg7: memref<1x128xf32, #tpu.memory_space<vmem>>, %arg8: memref<3x128x128xbf16, #tpu.memory_space<vmem>>, %arg9: memref<1x128xf32, #tpu.memory_space<vmem>>, %arg10: memref<1x128xf32, #tpu.memory_space<vmem>>, %arg11: memref<1x128xf32, #tpu.memory_space<vmem>>, %arg12: memref<32x32xf32, #tpu.memory_space<vmem>>, %arg13: memref<32x1xf32, #tpu.memory_space<vmem>>, %arg14: memref<32x1xf32, #tpu.memory_space<vmem>>, %arg15: memref<32x128xf32, #tpu.memory_space<vmem>>) attributes {dimension_semantics = [], scalar_prefetch = 0 : i64, scratch_operands = 0 : i64, tpu.core_type = #tpu.core_type<tc>} {
    %c0 = arith.constant 0 : index
    %c0_0 = arith.constant 0 : index
    %0 = vector.load %arg0[%c0, %c0_0] : memref<32x128xf32, #tpu.memory_space<vmem>>, vector<32x128xf32>
    %1 = arith.truncf %0 : vector<32x128xf32> to vector<32x128xbf16>
    %c0_1 = arith.constant 0 : index
    %c0_2 = arith.constant 0 : index
    %2 = vector.load %arg1[%c0_1, %c0_2] : memref<128x128xbf16, #tpu.memory_space<vmem>>, vector<128x128xbf16>
    %cst = arith.constant dense<0.000000e+00> : vector<32x128xf32>
    %3 = tpu.matmul %1, %2, %cst {dimension_numbers = #tpu.dot_dimension_numbers<[1], [0], [0], [1], [0, 0, 1, 1], [], []>} : vector<32x128xbf16>, vector<128x128xbf16>, vector<32x128xf32> -> vector<32x128xf32>
    %c0_3 = arith.constant 0 : index
    %c0_4 = arith.constant 0 : index
    %4 = vector.load %arg4[%c0_3, %c0_4] : memref<1x128xf32, #tpu.memory_space<vmem>>, vector<1x128xf32>
    %5 = vector.broadcast %4 : vector<1x128xf32> to vector<32x128xf32>
    %6 = arith.addf %3, %5 : vector<32x128xf32>
    %c0_5 = arith.constant 0 : index
    %c0_6 = arith.constant 0 : index
    %7 = vector.load %arg2[%c0_5, %c0_6] : memref<128x128xbf16, #tpu.memory_space<vmem>>, vector<128x128xbf16>
    %cst_7 = arith.constant dense<0.000000e+00> : vector<32x128xf32>
    %8 = tpu.matmul %1, %7, %cst_7 {dimension_numbers = #tpu.dot_dimension_numbers<[1], [0], [0], [1], [0, 0, 1, 1], [], []>} : vector<32x128xbf16>, vector<128x128xbf16>, vector<32x128xf32> -> vector<32x128xf32>
    %c0_8 = arith.constant 0 : index
    %c0_9 = arith.constant 0 : index
    %9 = vector.load %arg3[%c0_8, %c0_9] : memref<128x128xbf16, #tpu.memory_space<vmem>>, vector<128x128xbf16>
    %cst_10 = arith.constant dense<0.000000e+00> : vector<32x128xf32>
    %10 = tpu.matmul %1, %9, %cst_10 {dimension_numbers = #tpu.dot_dimension_numbers<[1], [0], [0], [1], [0, 0, 1, 1], [], []>} : vector<32x128xbf16>, vector<128x128xbf16>, vector<32x128xf32> -> vector<32x128xf32>
    %c0_11 = arith.constant 0 : index
    %c0_12 = arith.constant 0 : index
    %11 = vector.load %arg5[%c0_11, %c0_12] : memref<1x128xf32, #tpu.memory_space<vmem>>, vector<1x128xf32>
    %12 = vector.broadcast %11 : vector<1x128xf32> to vector<32x128xf32>
    %13 = arith.addf %10, %12 : vector<32x128xf32>
    %c0_13 = arith.constant 0 : index
    %c0_14 = arith.constant 0 : index
    %14 = vector.load %arg12[%c0_13, %c0_14] : memref<32x32xf32, #tpu.memory_space<vmem>>, vector<32x32xf32>
    %cst_15 = arith.constant 0.000000e+00 : f32
    %15 = vector.broadcast %cst_15 : f32 to vector<32x128xf32>
    %16 = vector.extract_strided_slice %6 {offsets = [0, 0], sizes = [32, 32], strides = [1, 1]} : vector<32x128xf32> to vector<32x32xf32>
    %17 = vector.extract_strided_slice %8 {offsets = [0, 0], sizes = [32, 32], strides = [1, 1]} : vector<32x128xf32> to vector<32x32xf32>
    %18 = vector.extract_strided_slice %13 {offsets = [0, 0], sizes = [32, 32], strides = [1, 1]} : vector<32x128xf32> to vector<32x32xf32>
    "tpu.trace_start"() <{level = 10 : i32, message = "re,te->rt"}> : () -> ()
    %cst_16 = arith.constant dense<0.000000e+00> : vector<32x32xf32>
    %19 = tpu.matmul %16, %17, %cst_16 {dimension_numbers = #tpu.dot_dimension_numbers<[1], [1], [0], [0], [0, 0, 1, 0], [], []>} : vector<32x32xf32>, vector<32x32xf32>, vector<32x32xf32> -> vector<32x32xf32>
    "tpu.trace_stop"() : () -> ()
    %20 = arith.addf %19, %14 : vector<32x32xf32>
    %cst_17 = arith.constant dense<0xFF800000> : vector<32xf32>
    %21 = vector.multi_reduction <maximumf>, %20, %cst_17 [1] : vector<32x32xf32> to vector<32xf32>
    %22 = vector.shape_cast %21 : vector<32xf32> to vector<32x1xf32>
    %23 = vector.broadcast %22 : vector<32x1xf32> to vector<32x32xf32>
    %24 = arith.subf %20, %23 : vector<32x32xf32>
    %25 = math.exp %24 : vector<32x32xf32>
    %cst_18 = arith.constant dense<0.000000e+00> : vector<32xf32>
    %26 = vector.multi_reduction <add>, %25, %cst_18 [1] : vector<32x32xf32> to vector<32xf32>
    %27 = vector.shape_cast %26 : vector<32xf32> to vector<32x1xf32>
    %28 = vector.broadcast %27 : vector<32x1xf32> to vector<32x32xf32>
    %29 = arith.divf %25, %28 : vector<32x32xf32>
    %cst_19 = arith.constant dense<0.000000e+00> : vector<32x32xf32>
    %30 = tpu.matmul %29, %18, %cst_19 {dimension_numbers = #tpu.dot_dimension_numbers<[1], [0], [0], [1], [0, 0, 1, 1], [], []>} : vector<32x32xf32>, vector<32x32xf32>, vector<32x32xf32> -> vector<32x32xf32>
    %31 = arith.truncf %30 : vector<32x32xf32> to vector<32x32xbf16>
    %c0_20 = arith.constant 0 : index
    %c0_21 = arith.constant 0 : index
    %c0_22 = arith.constant 0 : index
    %32 = vector.load %arg6[%c0_20, %c0_21, %c0_22] : memref<4x32x128xbf16, #tpu.memory_space<vmem>>, vector<1x32x128xbf16>
    %33 = vector.shape_cast %32 : vector<1x32x128xbf16> to vector<32x128xbf16>
    %cst_23 = arith.constant dense<0.000000e+00> : vector<32x128xf32>
    %34 = tpu.matmul %31, %33, %cst_23 {dimension_numbers = #tpu.dot_dimension_numbers<[1], [0], [0], [1], [0, 0, 1, 1], [], []>} : vector<32x32xbf16>, vector<32x128xbf16>, vector<32x128xf32> -> vector<32x128xf32>
    %35 = arith.addf %15, %34 : vector<32x128xf32>
    %36 = vector.extract_strided_slice %6 {offsets = [0, 32], sizes = [32, 32], strides = [1, 1]} : vector<32x128xf32> to vector<32x32xf32>
    %37 = vector.extract_strided_slice %8 {offsets = [0, 32], sizes = [32, 32], strides = [1, 1]} : vector<32x128xf32> to vector<32x32xf32>
    %38 = vector.extract_strided_slice %13 {offsets = [0, 32], sizes = [32, 32], strides = [1, 1]} : vector<32x128xf32> to vector<32x32xf32>
    "tpu.trace_start"() <{level = 10 : i32, message = "re,te->rt"}> : () -> ()
    %cst_24 = arith.constant dense<0.000000e+00> : vector<32x32xf32>
    %39 = tpu.matmul %36, %37, %cst_24 {dimension_numbers = #tpu.dot_dimension_numbers<[1], [1], [0], [0], [0, 0, 1, 0], [], []>} : vector<32x32xf32>, vector<32x32xf32>, vector<32x32xf32> -> vector<32x32xf32>
    "tpu.trace_stop"() : () -> ()
    %40 = arith.addf %39, %14 : vector<32x32xf32>
    %cst_25 = arith.constant dense<0xFF800000> : vector<32xf32>
    %41 = vector.multi_reduction <maximumf>, %40, %cst_25 [1] : vector<32x32xf32> to vector<32xf32>
    %42 = vector.shape_cast %41 : vector<32xf32> to vector<32x1xf32>
    %43 = vector.broadcast %42 : vector<32x1xf32> to vector<32x32xf32>
    %44 = arith.subf %40, %43 : vector<32x32xf32>
    %45 = math.exp %44 : vector<32x32xf32>
    %cst_26 = arith.constant dense<0.000000e+00> : vector<32xf32>
    %46 = vector.multi_reduction <add>, %45, %cst_26 [1] : vector<32x32xf32> to vector<32xf32>
    %47 = vector.shape_cast %46 : vector<32xf32> to vector<32x1xf32>
    %48 = vector.broadcast %47 : vector<32x1xf32> to vector<32x32xf32>
    %49 = arith.divf %45, %48 : vector<32x32xf32>
    %cst_27 = arith.constant dense<0.000000e+00> : vector<32x32xf32>
    %50 = tpu.matmul %49, %38, %cst_27 {dimension_numbers = #tpu.dot_dimension_numbers<[1], [0], [0], [1], [0, 0, 1, 1], [], []>} : vector<32x32xf32>, vector<32x32xf32>, vector<32x32xf32> -> vector<32x32xf32>
    %51 = arith.truncf %50 : vector<32x32xf32> to vector<32x32xbf16>
    %c1 = arith.constant 1 : index
    %c0_28 = arith.constant 0 : index
    %c0_29 = arith.constant 0 : index
    %52 = vector.load %arg6[%c1, %c0_28, %c0_29] : memref<4x32x128xbf16, #tpu.memory_space<vmem>>, vector<1x32x128xbf16>
    %53 = vector.shape_cast %52 : vector<1x32x128xbf16> to vector<32x128xbf16>
    %cst_30 = arith.constant dense<0.000000e+00> : vector<32x128xf32>
    %54 = tpu.matmul %51, %53, %cst_30 {dimension_numbers = #tpu.dot_dimension_numbers<[1], [0], [0], [1], [0, 0, 1, 1], [], []>} : vector<32x32xbf16>, vector<32x128xbf16>, vector<32x128xf32> -> vector<32x128xf32>
    %55 = arith.addf %35, %54 : vector<32x128xf32>
    %56 = vector.extract_strided_slice %6 {offsets = [0, 64], sizes = [32, 32], strides = [1, 1]} : vector<32x128xf32> to vector<32x32xf32>
    %57 = vector.extract_strided_slice %8 {offsets = [0, 64], sizes = [32, 32], strides = [1, 1]} : vector<32x128xf32> to vector<32x32xf32>
    %58 = vector.extract_strided_slice %13 {offsets = [0, 64], sizes = [32, 32], strides = [1, 1]} : vector<32x128xf32> to vector<32x32xf32>
    "tpu.trace_start"() <{level = 10 : i32, message = "re,te->rt"}> : () -> ()
    %cst_31 = arith.constant dense<0.000000e+00> : vector<32x32xf32>
    %59 = tpu.matmul %56, %57, %cst_31 {dimension_numbers = #tpu.dot_dimension_numbers<[1], [1], [0], [0], [0, 0, 1, 0], [], []>} : vector<32x32xf32>, vector<32x32xf32>, vector<32x32xf32> -> vector<32x32xf32>
    "tpu.trace_stop"() : () -> ()
    %60 = arith.addf %59, %14 : vector<32x32xf32>
    %cst_32 = arith.constant dense<0xFF800000> : vector<32xf32>
    %61 = vector.multi_reduction <maximumf>, %60, %cst_32 [1] : vector<32x32xf32> to vector<32xf32>
    %62 = vector.shape_cast %61 : vector<32xf32> to vector<32x1xf32>
    %63 = vector.broadcast %62 : vector<32x1xf32> to vector<32x32xf32>
    %64 = arith.subf %60, %63 : vector<32x32xf32>
    %65 = math.exp %64 : vector<32x32xf32>
    %cst_33 = arith.constant dense<0.000000e+00> : vector<32xf32>
    %66 = vector.multi_reduction <add>, %65, %cst_33 [1] : vector<32x32xf32> to vector<32xf32>
    %67 = vector.shape_cast %66 : vector<32xf32> to vector<32x1xf32>
    %68 = vector.broadcast %67 : vector<32x1xf32> to vector<32x32xf32>
    %69 = arith.divf %65, %68 : vector<32x32xf32>
    %cst_34 = arith.constant dense<0.000000e+00> : vector<32x32xf32>
    %70 = tpu.matmul %69, %58, %cst_34 {dimension_numbers = #tpu.dot_dimension_numbers<[1], [0], [0], [1], [0, 0, 1, 1], [], []>} : vector<32x32xf32>, vector<32x32xf32>, vector<32x32xf32> -> vector<32x32xf32>
    %71 = arith.truncf %70 : vector<32x32xf32> to vector<32x32xbf16>
    %c2 = arith.constant 2 : index
    %c0_35 = arith.constant 0 : index
    %c0_36 = arith.constant 0 : index
    %72 = vector.load %arg6[%c2, %c0_35, %c0_36] : memref<4x32x128xbf16, #tpu.memory_space<vmem>>, vector<1x32x128xbf16>
    %73 = vector.shape_cast %72 : vector<1x32x128xbf16> to vector<32x128xbf16>
    %cst_37 = arith.constant dense<0.000000e+00> : vector<32x128xf32>
    %74 = tpu.matmul %71, %73, %cst_37 {dimension_numbers = #tpu.dot_dimension_numbers<[1], [0], [0], [1], [0, 0, 1, 1], [], []>} : vector<32x32xbf16>, vector<32x128xbf16>, vector<32x128xf32> -> vector<32x128xf32>
    %75 = arith.addf %55, %74 : vector<32x128xf32>
    %76 = vector.extract_strided_slice %6 {offsets = [0, 96], sizes = [32, 32], strides = [1, 1]} : vector<32x128xf32> to vector<32x32xf32>
    %77 = vector.extract_strided_slice %8 {offsets = [0, 96], sizes = [32, 32], strides = [1, 1]} : vector<32x128xf32> to vector<32x32xf32>
    %78 = vector.extract_strided_slice %13 {offsets = [0, 96], sizes = [32, 32], strides = [1, 1]} : vector<32x128xf32> to vector<32x32xf32>
    "tpu.trace_start"() <{level = 10 : i32, message = "re,te->rt"}> : () -> ()
    %cst_38 = arith.constant dense<0.000000e+00> : vector<32x32xf32>
    %79 = tpu.matmul %76, %77, %cst_38 {dimension_numbers = #tpu.dot_dimension_numbers<[1], [1], [0], [0], [0, 0, 1, 0], [], []>} : vector<32x32xf32>, vector<32x32xf32>, vector<32x32xf32> -> vector<32x32xf32>
    "tpu.trace_stop"() : () -> ()
    %80 = arith.addf %79, %14 : vector<32x32xf32>
    %cst_39 = arith.constant dense<0xFF800000> : vector<32xf32>
    %81 = vector.multi_reduction <maximumf>, %80, %cst_39 [1] : vector<32x32xf32> to vector<32xf32>
    %82 = vector.shape_cast %81 : vector<32xf32> to vector<32x1xf32>
    %83 = vector.broadcast %82 : vector<32x1xf32> to vector<32x32xf32>
    %84 = arith.subf %80, %83 : vector<32x32xf32>
    %85 = math.exp %84 : vector<32x32xf32>
    %cst_40 = arith.constant dense<0.000000e+00> : vector<32xf32>
    %86 = vector.multi_reduction <add>, %85, %cst_40 [1] : vector<32x32xf32> to vector<32xf32>
    %87 = vector.shape_cast %86 : vector<32xf32> to vector<32x1xf32>
    %88 = vector.broadcast %87 : vector<32x1xf32> to vector<32x32xf32>
    %89 = arith.divf %85, %88 : vector<32x32xf32>
    %cst_41 = arith.constant dense<0.000000e+00> : vector<32x32xf32>
    %90 = tpu.matmul %89, %78, %cst_41 {dimension_numbers = #tpu.dot_dimension_numbers<[1], [0], [0], [1], [0, 0, 1, 1], [], []>} : vector<32x32xf32>, vector<32x32xf32>, vector<32x32xf32> -> vector<32x32xf32>
    %91 = arith.truncf %90 : vector<32x32xf32> to vector<32x32xbf16>
    %c3 = arith.constant 3 : index
    %c0_42 = arith.constant 0 : index
    %c0_43 = arith.constant 0 : index
    %92 = vector.load %arg6[%c3, %c0_42, %c0_43] : memref<4x32x128xbf16, #tpu.memory_space<vmem>>, vector<1x32x128xbf16>
    %93 = vector.shape_cast %92 : vector<1x32x128xbf16> to vector<32x128xbf16>
    %cst_44 = arith.constant dense<0.000000e+00> : vector<32x128xf32>
    %94 = tpu.matmul %91, %93, %cst_44 {dimension_numbers = #tpu.dot_dimension_numbers<[1], [0], [0], [1], [0, 0, 1, 1], [], []>} : vector<32x32xbf16>, vector<32x128xbf16>, vector<32x128xf32> -> vector<32x128xf32>
    %95 = arith.addf %75, %94 : vector<32x128xf32>
    %c0_45 = arith.constant 0 : index
    %c0_46 = arith.constant 0 : index
    %96 = vector.load %arg7[%c0_45, %c0_46] : memref<1x128xf32, #tpu.memory_space<vmem>>, vector<1x128xf32>
    %97 = vector.broadcast %96 : vector<1x128xf32> to vector<32x128xf32>
    %98 = arith.addf %95, %97 : vector<32x128xf32>
    %c2_i32 = arith.constant 2 : i32
    %99 = tpu.dynamic_rotate %0 by %c2_i32 dim 0 : vector<32x128xf32>, i32 -> vector<32x128xf32>
    %c0_47 = arith.constant 0 : index
    %c0_48 = arith.constant 0 : index
    %100 = vector.load %arg13[%c0_47, %c0_48] : memref<32x1xf32, #tpu.memory_space<vmem>>, vector<32x1xf32>
    %101 = vector.broadcast %100 : vector<32x1xf32> to vector<32x128xf32>
    %102 = arith.mulf %99, %101 : vector<32x128xf32>
    %c30_i32 = arith.constant 30 : i32
    %103 = tpu.dynamic_rotate %0 by %c30_i32 dim 0 : vector<32x128xf32>, i32 -> vector<32x128xf32>
    %c0_49 = arith.constant 0 : index
    %c0_50 = arith.constant 0 : index
    %104 = vector.load %arg14[%c0_49, %c0_50] : memref<32x1xf32, #tpu.memory_space<vmem>>, vector<32x1xf32>
    %105 = vector.broadcast %104 : vector<32x1xf32> to vector<32x128xf32>
    %106 = arith.mulf %103, %105 : vector<32x128xf32>
    %107 = arith.truncf %102 : vector<32x128xf32> to vector<32x128xbf16>
    %c0_51 = arith.constant 0 : index
    %c0_52 = arith.constant 0 : index
    %c0_53 = arith.constant 0 : index
    %108 = vector.load %arg8[%c0_51, %c0_52, %c0_53] : memref<3x128x128xbf16, #tpu.memory_space<vmem>>, vector<1x128x128xbf16>
    %109 = vector.shape_cast %108 : vector<1x128x128xbf16> to vector<128x128xbf16>
    %cst_54 = arith.constant dense<0.000000e+00> : vector<32x128xf32>
    %110 = tpu.matmul %107, %109, %cst_54 {dimension_numbers = #tpu.dot_dimension_numbers<[1], [0], [0], [1], [0, 0, 1, 1], [], []>} : vector<32x128xbf16>, vector<128x128xbf16>, vector<32x128xf32> -> vector<32x128xf32>
    %c1_55 = arith.constant 1 : index
    %c0_56 = arith.constant 0 : index
    %c0_57 = arith.constant 0 : index
    %111 = vector.load %arg8[%c1_55, %c0_56, %c0_57] : memref<3x128x128xbf16, #tpu.memory_space<vmem>>, vector<1x128x128xbf16>
    %112 = vector.shape_cast %111 : vector<1x128x128xbf16> to vector<128x128xbf16>
    %cst_58 = arith.constant dense<0.000000e+00> : vector<32x128xf32>
    %113 = tpu.matmul %1, %112, %cst_58 {dimension_numbers = #tpu.dot_dimension_numbers<[1], [0], [0], [1], [0, 0, 1, 1], [], []>} : vector<32x128xbf16>, vector<128x128xbf16>, vector<32x128xf32> -> vector<32x128xf32>
    %114 = arith.addf %110, %113 : vector<32x128xf32>
    %115 = arith.truncf %106 : vector<32x128xf32> to vector<32x128xbf16>
    %c2_59 = arith.constant 2 : index
    %c0_60 = arith.constant 0 : index
    %c0_61 = arith.constant 0 : index
    %116 = vector.load %arg8[%c2_59, %c0_60, %c0_61] : memref<3x128x128xbf16, #tpu.memory_space<vmem>>, vector<1x128x128xbf16>
    %117 = vector.shape_cast %116 : vector<1x128x128xbf16> to vector<128x128xbf16>
    %cst_62 = arith.constant dense<0.000000e+00> : vector<32x128xf32>
    %118 = tpu.matmul %115, %117, %cst_62 {dimension_numbers = #tpu.dot_dimension_numbers<[1], [0], [0], [1], [0, 0, 1, 1], [], []>} : vector<32x128xbf16>, vector<128x128xbf16>, vector<32x128xf32> -> vector<32x128xf32>
    %119 = arith.addf %114, %118 : vector<32x128xf32>
    %c0_63 = arith.constant 0 : index
    %c0_64 = arith.constant 0 : index
    %120 = vector.load %arg9[%c0_63, %c0_64] : memref<1x128xf32, #tpu.memory_space<vmem>>, vector<1x128xf32>
    %121 = vector.broadcast %120 : vector<1x128xf32> to vector<32x128xf32>
    %122 = arith.addf %119, %121 : vector<32x128xf32>
    %123 = arith.addf %98, %122 : vector<32x128xf32>
    %cst_65 = arith.constant dense<0.000000e+00> : vector<32xf32>
    %124 = vector.multi_reduction <add>, %123, %cst_65 [1] : vector<32x128xf32> to vector<32xf32>
    %125 = vector.shape_cast %124 : vector<32xf32> to vector<32x1xf32>
    %cst_66 = arith.constant 1.280000e+02 : f32
    %126 = vector.broadcast %cst_66 : f32 to vector<32x1xf32>
    %127 = arith.divf %125, %126 : vector<32x1xf32>
    %128 = vector.broadcast %127 : vector<32x1xf32> to vector<32x128xf32>
    %129 = arith.subf %123, %128 : vector<32x128xf32>
    %130 = arith.mulf %129, %129 : vector<32x128xf32>
    %cst_67 = arith.constant dense<0.000000e+00> : vector<32xf32>
    %131 = vector.multi_reduction <add>, %130, %cst_67 [1] : vector<32x128xf32> to vector<32xf32>
    %132 = vector.shape_cast %131 : vector<32xf32> to vector<32x1xf32>
    %cst_68 = arith.constant 1.280000e+02 : f32
    %133 = vector.broadcast %cst_68 : f32 to vector<32x1xf32>
    %134 = arith.divf %132, %133 : vector<32x1xf32>
    %cst_69 = arith.constant 9.99999974E-6 : f32
    %135 = vector.broadcast %cst_69 : f32 to vector<32x1xf32>
    %136 = arith.addf %134, %135 : vector<32x1xf32>
    %137 = math.rsqrt %136 : vector<32x1xf32>
    %138 = vector.broadcast %137 : vector<32x1xf32> to vector<32x128xf32>
    %139 = arith.mulf %129, %138 : vector<32x128xf32>
    %c0_70 = arith.constant 0 : index
    %c0_71 = arith.constant 0 : index
    %140 = vector.load %arg10[%c0_70, %c0_71] : memref<1x128xf32, #tpu.memory_space<vmem>>, vector<1x128xf32>
    %141 = vector.broadcast %140 : vector<1x128xf32> to vector<32x128xf32>
    %142 = arith.mulf %139, %141 : vector<32x128xf32>
    %c0_72 = arith.constant 0 : index
    %c0_73 = arith.constant 0 : index
    %143 = vector.load %arg11[%c0_72, %c0_73] : memref<1x128xf32, #tpu.memory_space<vmem>>, vector<1x128xf32>
    %144 = vector.broadcast %143 : vector<1x128xf32> to vector<32x128xf32>
    %145 = arith.addf %142, %144 : vector<32x128xf32>
    %c0_74 = arith.constant 0 : index
    %c0_75 = arith.constant 0 : index
    %146 = vector.load %arg15[%c0_74, %c0_75] : memref<32x128xf32, #tpu.memory_space<vmem>>, vector<32x128xf32>
    tpu.vector_store %arg15[%c0_74, %c0_75], %145 {strides = array<i32>} : memref<32x128xf32, #tpu.memory_space<vmem>>, vector<32x128xf32>,
    return
  }
}

</mosaic_0001>

<llo_original>
// kernel: _lambda_.1
$region0: #{_lambda_.1}
  #allocation0 [shape = 'u32[]', space=smem, size = 0x4, offset = 0x4, fixed_abs, tag = 'smem constant byte address 0x4 - core index']
  #allocation1 [shape = 'u32[144,128]{1,0:T(1,128)}', space=vmem, size = 0x12000, scoped, tag = 'internal scratch']
  %s0 = inlined_call_operand.hbm [shape: f32[32,128], index: 0, kind: input, shape index: {}]
  %s1 = inlined_call_operand.vmem [shape: bf16[128,128], index: 1, kind: input, shape index: {}]
  %s2 = inlined_call_operand.hbm [shape: bf16[128,128], index: 2, kind: input, shape index: {}]
  %s3 = inlined_call_operand.hbm [shape: bf16[128,128], index: 3, kind: input, shape index: {}]
  %s4 = inlined_call_operand.vmem [shape: f32[1,128], index: 4, kind: input, shape index: {}]
  %s5 = inlined_call_operand.vmem [shape: f32[1,128], index: 5, kind: input, shape index: {}]
  %s6 = inlined_call_operand.hbm [shape: bf16[4,32,128], index: 6, kind: input, shape index: {}]
  %s7 = inlined_call_operand.vmem [shape: f32[1,128], index: 7, kind: input, shape index: {}]
  %s8 = inlined_call_operand.hbm [shape: bf16[3,128,128], index: 8, kind: input, shape index: {}]
  %s9 = inlined_call_operand.vmem [shape: f32[1,128], index: 9, kind: input, shape index: {}]
  %s10 = inlined_call_operand.vmem [shape: f32[1,128], index: 10, kind: input, shape index: {}]
  %s11 = inlined_call_operand.vmem [shape: f32[1,128], index: 11, kind: input, shape index: {}]
  %s12 = inlined_call_operand.hbm [shape: f32[32,32], index: 12, kind: input, shape index: {}]
  %s13 = inlined_call_operand.vmem [shape: f32[32,1], index: 13, kind: input, shape index: {}]
  %s14 = inlined_call_operand.vmem [shape: f32[32,1], index: 14, kind: input, shape index: {}]
  %s15 = inlined_call_operand.hbm [shape: f32[32,128], index: 15, kind: output, shape index: {}]
  %s16 = sld [smem:[#allocation0]]
  $region94: #{_lambda_.1} parent=0
    _
  %s18 = ssub.s32 1, %s16
  %s19 = scalar_select 0, %s18, %s16
  $region1: #{_lambda_.1} parent=0
    #allocation2 [shape = 'u8[16384]{0}', space=vmem, size = 0x4000, scoped, tag = 'input window, operand 0, single buffered']
    #allocation3 [shape = 's32[1]{0}', space=sflag, size = 0x4, scoped, tag = 'scoped memory for _lambda_.1']
    #allocation4 [shape = 's32[1]{0}', space=sflag, size = 0x4, scoped, tag = 'scoped memory for _lambda_.1']
    #allocation5 [shape = 'u8[32768]{0}', space=vmem, size = 0x8000, scoped, tag = 'input window, operand 2, single buffered']
    #allocation6 [shape = 's32[1]{0}', space=sflag, size = 0x4, scoped, tag = 'scoped memory for _lambda_.1']
    #allocation7 [shape = 'u8[32768]{0}', space=vmem, size = 0x8000, scoped, tag = 'input window, operand 3, single buffered']
    #allocation8 [shape = 'u8[32768]{0}', space=vmem, size = 0x8000, scoped, tag = 'input window, operand 6, single buffered']
    #allocation9 [shape = 's32[1]{0}', space=sflag, size = 0x4, scoped, tag = 'scoped memory for _lambda_.1']
    #allocation10 [shape = 'u8[98304]{0}', space=vmem, size = 0x18000, scoped, tag = 'input window, operand 8, single buffered']
    #allocation11 [shape = 'u8[16384]{0}', space=vmem, size = 0x4000, scoped, tag = 'input window, operand 12, single buffered']
    #allocation12 [shape = 's32[1]{0}', space=sflag, size = 0x4, scoped, tag = 'scoped memory for _lambda_.1']
    #allocation13 [shape = 'u8[16384]{0}', space=vmem, size = 0x4000, scoped, tag = 'output window, operand 0, single buffered']
    %20 = vsyncpa [#allocation3], 0
    %21 = vsyncpa [#allocation6], 0
    %22 = vsyncpa [#allocation9], 0
    %23 = vsyncpa [#allocation12], 0
    %24 = vsyncpa [#allocation4], 0
    // Predicated region
    $region2: #{_lambda_.1} parent=1 // pred_check
      _
    $region3: #{_lambda_.1} parent=1 // pred_check_branch
      %26 = sbr.rel (0) target = $region5
    $region4: #{_lambda_.1} parent=1 // pred_region
      %s28 = ssub.s32 512, 512
      %29 = vsyncadd [#allocation3], %s28
      %s30 = sshll.u32 [#allocation2], 4
      %s31 = int_to_ptr.vmem [resolvable:$true] %s30
      %36 = dma.hbm_to_vmem [thread:$0]  %s0, 512, %s31, [#allocation3], 128, 128, 8
    $region5: #{_lambda_.1} parent=1 // pred_fallthru
      _
    // Predicated region
    $region6: #{_lambda_.1} parent=1 // pred_check
      _
    $region7: #{_lambda_.1} parent=1 // pred_check_branch
      %38 = sbr.rel (0) target = $region9
    $region8: #{_lambda_.1} parent=1 // pred_region
      _
    $region9: #{_lambda_.1} parent=1 // pred_fallthru
      _
    // Predicated region
    $region10: #{_lambda_.1} parent=1 // pred_check
      _
    $region11: #{_lambda_.1} parent=1 // pred_check_branch
      %40 = sbr.rel (0) target = $region13
    $region12: #{_lambda_.1} parent=1 // pred_region
      %s42 = ssub.s32 1024, 1024
      %43 = vsyncadd [#allocation6], %s42
      %s44 = sshll.u32 [#allocation5], 4
      %s45 = int_to_ptr.vmem [resolvable:$true] %s44
      %50 = dma.hbm_to_vmem [thread:$0]  %s2, 1024, %s45, [#allocation6], 64, 64, 4
    $region13: #{_lambda_.1} parent=1 // pred_fallthru
      _
    // Predicated region
    $region14: #{_lambda_.1} parent=1 // pred_check
      _
    $region15: #{_lambda_.1} parent=1 // pred_check_branch
      %52 = sbr.rel (0) target = $region17
    $region16: #{_lambda_.1} parent=1 // pred_region
      %s54 = ssub.s32 1024, 1024
      %55 = vsyncadd [#allocation6], %s54
      %s56 = sshll.u32 [#allocation7], 4
      %s57 = int_to_ptr.vmem [resolvable:$true] %s56
      %62 = dma.hbm_to_vmem [thread:$0]  %s3, 1024, %s57, [#allocation6], 64, 64, 4
    $region17: #{_lambda_.1} parent=1 // pred_fallthru
      _
    // Predicated region
    $region18: #{_lambda_.1} parent=1 // pred_check
      _
    $region19: #{_lambda_.1} parent=1 // pred_check_branch
      %64 = sbr.rel (0) target = $region21
    $region20: #{_lambda_.1} parent=1 // pred_region
      _
    $region21: #{_lambda_.1} parent=1 // pred_fallthru
      _
    // Predicated region
    $region22: #{_lambda_.1} parent=1 // pred_check
      _
    $region23: #{_lambda_.1} parent=1 // pred_check_branch
      %66 = sbr.rel (0) target = $region25
    $region24: #{_lambda_.1} parent=1 // pred_region
      _
    $region25: #{_lambda_.1} parent=1 // pred_fallthru
      _
    // Predicated region
    $region26: #{_lambda_.1} parent=1 // pred_check
      _
    $region27: #{_lambda_.1} parent=1 // pred_check_branch
      %68 = sbr.rel (0) target = $region29
    $region28: #{_lambda_.1} parent=1 // pred_region
      %s70 = ssub.s32 1024, 1024
      %71 = vsyncadd [#allocation9], %s70
      %s72 = sshll.u32 [#allocation8], 4
      %s73 = int_to_ptr.vmem [resolvable:$true] %s72
      %78 = dma.hbm_to_vmem [thread:$0]  %s6, 1024, %s73, [#allocation9], 64, 64, 4
    $region29: #{_lambda_.1} parent=1 // pred_fallthru
      _
    // Predicated region
    $region30: #{_lambda_.1} parent=1 // pred_check
      _
    $region31: #{_lambda_.1} parent=1 // pred_check_branch
      %80 = sbr.rel (0) target = $region33
    $region32: #{_lambda_.1} parent=1 // pred_region
      _
    $region33: #{_lambda_.1} parent=1 // pred_fallthru
      _
    // Predicated region
    $region34: #{_lambda_.1} parent=1 // pred_check
      _
    $region35: #{_lambda_.1} parent=1 // pred_check_branch
      %82 = sbr.rel (0) target = $region37
    $region36: #{_lambda_.1} parent=1 // pred_region
      %s84 = ssub.s32 3072, 3072
      %85 = vsyncadd [#allocation9], %s84
      %s86 = sshll.u32 [#allocation10], 4
      %s87 = int_to_ptr.vmem [resolvable:$true] %s86
      %92 = dma.hbm_to_vmem [thread:$0]  %s8, 3072, %s87, [#allocation9], 64, 64, 4
    $region37: #{_lambda_.1} parent=1 // pred_fallthru
      _
    // Predicated region
    $region38: #{_lambda_.1} parent=1 // pred_check
      _
    $region39: #{_lambda_.1} parent=1 // pred_check_branch
      %94 = sbr.rel (0) target = $region41
    $region40: #{_lambda_.1} parent=1 // pred_region
      _
    $region41: #{_lambda_.1} parent=1 // pred_fallthru
      _
    // Predicated region
    $region42: #{_lambda_.1} parent=1 // pred_check
      _
    $region43: #{_lambda_.1} parent=1 // pred_check_branch
      %96 = sbr.rel (0) target = $region45
    $region44: #{_lambda_.1} parent=1 // pred_region
      _
    $region45: #{_lambda_.1} parent=1 // pred_fallthru
      _
    // Predicated region
    $region46: #{_lambda_.1} parent=1 // pred_check
      _
    $region47: #{_lambda_.1} parent=1 // pred_check_branch
      %98 = sbr.rel (0) target = $region49
    $region48: #{_lambda_.1} parent=1 // pred_region
      _
    $region49: #{_lambda_.1} parent=1 // pred_fallthru
      _
    // Predicated region
    $region50: #{_lambda_.1} parent=1 // pred_check
      _
    $region51: #{_lambda_.1} parent=1 // pred_check_branch
      %100 = sbr.rel (0) target = $region53
    $region52: #{_lambda_.1} parent=1 // pred_region
      %s102 = ssub.s32 512, 512
      %103 = vsyncadd [#allocation12], %s102
      %s104 = sshll.u32 [#allocation11], 4
      %s105 = int_to_ptr.vmem [resolvable:$true] %s104
      %110 = dma.hbm_to_vmem [thread:$0]  %s12, 512, %s105, [#allocation12], 128, 128, 8
    $region53: #{_lambda_.1} parent=1 // pred_fallthru
      _
    // Predicated region
    $region54: #{_lambda_.1} parent=1 // pred_check
      _
    $region55: #{_lambda_.1} parent=1 // pred_check_branch
      %112 = sbr.rel (0) target = $region57
    $region56: #{_lambda_.1} parent=1 // pred_region
      _
    $region57: #{_lambda_.1} parent=1 // pred_fallthru
      _
    // Predicated region
    $region58: #{_lambda_.1} parent=1 // pred_check
      _
    $region59: #{_lambda_.1} parent=1 // pred_check_branch
      %114 = sbr.rel (0) target = $region61
    $region60: #{_lambda_.1} parent=1 // pred_region
      _
    $region61: #{_lambda_.1} parent=1 // pred_fallthru
      _
    // Predicated region
    $region62: #{_lambda_.1} parent=1 // pred_check
      _
    $region63: #{_lambda_.1} parent=1 // pred_check_branch
      %116 = sbr.rel (0) target = $region65
    $region64: #{_lambda_.1} parent=1 // pred_region
      %117 = dma.done [#allocation3], 512
    $region65: #{_lambda_.1} parent=1 // pred_fallthru
      _
    // Predicated region
    $region66: #{_lambda_.1} parent=1 // pred_check
      _
    $region67: #{_lambda_.1} parent=1 // pred_check_branch
      %119 = sbr.rel (0) target = $region69
    $region68: #{_lambda_.1} parent=1 // pred_region
      %120 = dma.done [#allocation6], 1024
    $region69: #{_lambda_.1} parent=1 // pred_fallthru
      _
    // Predicated region
    $region70: #{_lambda_.1} parent=1 // pred_check
      _
    $region71: #{_lambda_.1} parent=1 // pred_check_branch
      %122 = sbr.rel (0) target = $region73
    $region72: #{_lambda_.1} parent=1 // pred_region
      %123 = dma.done [#allocation6], 1024
    $region73: #{_lambda_.1} parent=1 // pred_fallthru
      _
    // Predicated region
    $region74: #{_lambda_.1} parent=1 // pred_check
      _
    $region75: #{_lambda_.1} parent=1 // pred_check_branch
      %125 = sbr.rel (0) target = $region77
    $region76: #{_lambda_.1} parent=1 // pred_region
      %126 = dma.done [#allocation9], 1024
    $region77: #{_lambda_.1} parent=1 // pred_fallthru
      _
    // Predicated region
    $region78: #{_lambda_.1} parent=1 // pred_check
      _
    $region79: #{_lambda_.1} parent=1 // pred_check_branch
      %128 = sbr.rel (0) target = $region81
    $region80: #{_lambda_.1} parent=1 // pred_region
      %129 = dma.done [#allocation9], 3072
    $region81: #{_lambda_.1} parent=1 // pred_fallthru
      _
    // Predicated region
    $region82: #{_lambda_.1} parent=1 // pred_check
      _
    $region83: #{_lambda_.1} parent=1 // pred_check_branch
      %131 = sbr.rel (0) target = $region85
    $region84: #{_lambda_.1} parent=1 // pred_region
      %132 = dma.done [#allocation12], 512
    $region85: #{_lambda_.1} parent=1 // pred_fallthru
      _
    %v134 = vld [vmem:[#allocation2] sm:$0xff]
    %v135 = vld [vmem:[#allocation2 + $0x8] sm:$0xff]
    %v136 = vld [vmem:[#allocation2 + $0x10] sm:$0xff]
    %v137 = vld [vmem:[#allocation2 + $0x18] sm:$0xff]
    %v138 = vpack.c.bf16 %v135, %v134
    %v139 = vpack.c.bf16 %v137, %v136
    %v140 = vld [vmem:[%s1] sm:$0xf]
    %v141 = vld [vmem:[%s1 + $0x4] sm:$0xf]
    %v142 = vld [vmem:[%s1 + $0x8] sm:$0xf]
    %v143 = vld [vmem:[%s1 + $0xc] sm:$0xf]
    %v144 = vld [vmem:[%s1 + $0x10] sm:$0xf]
    %v145 = vld [vmem:[%s1 + $0x14] sm:$0xf]
    %v146 = vld [vmem:[%s1 + $0x18] sm:$0xf]
    %v147 = vld [vmem:[%s1 + $0x1c] sm:$0xf]
    %v148 = vld [vmem:[%s1 + $0x20] sm:$0xf]
    %v149 = vld [vmem:[%s1 + $0x24] sm:$0xf]
    %v150 = vld [vmem:[%s1 + $0x28] sm:$0xf]
    %v151 = vld [vmem:[%s1 + $0x2c] sm:$0xf]
    %v152 = vld [vmem:[%s1 + $0x30] sm:$0xf]
    %v153 = vld [vmem:[%s1 + $0x34] sm:$0xf]
    %v154 = vld [vmem:[%s1 + $0x38] sm:$0xf]
    %v155 = vld [vmem:[%s1 + $0x3c] sm:$0xf]
    %v156 = vld [vmem:[%s4] sm:$0x1]
    %v158 = vlaneseq
    %v159 = vshrl.u32 %v158, 7
    %v160 = vsub.s32 0, %v159
    %v161 = vrot.slane %v156, %v160
    %v179 = vunpack.c.l.b16 %v140
    %v180 = vunpack.c.l.b16 %v141
    %v181 = vunpack.c.l.b16 %v142
    %v182 = vunpack.c.l.b16 %v143
    %v183 = vunpack.c.l.b16 %v144
    %v184 = vunpack.c.l.b16 %v145
    %v185 = vunpack.c.l.b16 %v146
    %v186 = vunpack.c.l.b16 %v147
    %v187 = vunpack.c.l.b16 %v148
    %v188 = vunpack.c.l.b16 %v149
    %v189 = vunpack.c.l.b16 %v150
    %v190 = vunpack.c.l.b16 %v151
    %v191 = vunpack.c.l.b16 %v152
    %v192 = vunpack.c.l.b16 %v153
    %v193 = vunpack.c.l.b16 %v154
    %v194 = vunpack.c.l.b16 %v155
    %v195 = vpack.c.b16 %v180, %v179
    %v196 = vpack.c.b16 %v182, %v181
    %v197 = vpack.c.b16 %v184, %v183
    %v198 = vpack.c.b16 %v186, %v185
    %v199 = vpack.c.b16 %v188, %v187
    %v200 = vpack.c.b16 %v190, %v189
    %v201 = vpack.c.b16 %v192, %v191
    %v202 = vpack.c.b16 %v194, %v193
    %211 = vmatprep.subr.bf16.mxu0 0
    %212 = vmatpush1.bf16.msra.mxu0 %v202
    %213 = vmatprep.subr.bf16.mxu0 0
    %214 = vmatpush1.bf16.msra.mxu0 %v201
    %215 = vmatprep.subr.bf16.mxu0 0
    %216 = vmatpush1.bf16.msra.mxu0 %v200
    %217 = vmatprep.subr.bf16.mxu0 0
    %218 = vmatpush1.bf16.msra.mxu0 %v199
    %219 = vmatprep.subr.bf16.mxu0 0
    %220 = vmatpush1.bf16.msra.mxu0 %v198
    %221 = vmatprep.subr.bf16.mxu0 0
    %222 = vmatpush1.bf16.msra.mxu0 %v197
    %223 = vmatprep.subr.bf16.mxu0 0
    %224 = vmatpush1.bf16.msra.mxu0 %v196
    %225 = vmatprep.subr.bf16.mxu0 0
    %226 = vmatpush1.bf16.msra.mxu0 %v195
    %227 = vmatprep.subr.bf16.mxu0 0
    %228 = vmatpush2.bf16.msra.mxu0 0
    %229 = vmatprep.subr.bf16.mxu0 0
    %230 = vmatpush2.bf16.msra.mxu0 0
    %231 = vmatprep.subr.bf16.mxu0 0
    %232 = vmatpush2.bf16.msra.mxu0 0
    %233 = vmatprep.subr.bf16.mxu0 0
    %234 = vmatpush2.bf16.msra.mxu0 0
    %235 = vmatprep.subr.bf16.mxu0 0
    %236 = vmatpush2.bf16.msra.mxu0 0
    %237 = vmatprep.subr.bf16.mxu0 0
    %238 = vmatpush2.bf16.msra.mxu0 0
    %239 = vmatprep.subr.bf16.mxu0 0
    %240 = vmatpush2.bf16.msra.mxu0 0
    %241 = vmatprep.subr.bf16.mxu0 0
    %242 = vmatpush2.bf16.msra.mxu0 0
    %243 = vmatprep.mubr.bf16.mxu0 0
    %244 = vmatmul.mubr.bf16.gmra.mxu0 %v138
    %v245 = vpop.f32.mrf.mxu0
    %v246 = vadd.f32 %v161, %v245
    %v247 = vpop.f32.mrf.mxu0
    %v248 = vpop.f32.mrf.mxu0
    %v249 = vadd.f32 %v161, %v248
    %v250 = vpop.f32.mrf.mxu0
    %251 = vmatprep.mubr.bf16.mxu0 0
    %252 = vmatmul.mubr.bf16.gmra.mxu0 %v139
    %v253 = vpop.f32.mrf.mxu0
    %v254 = vadd.f32 %v161, %v253
    %v255 = vpop.f32.mrf.mxu0
    %v256 = vpop.f32.mrf.mxu0
    %v257 = vadd.f32 %v161, %v256
    %v258 = vpop.f32.mrf.mxu0
    %259 = vdwg.mxu0
    %v260 = vld [vmem:[#allocation5] sm:$0xf]
    %v261 = vld [vmem:[#allocation5 + $0x4] sm:$0xf]
    %v262 = vld [vmem:[#allocation5 + $0x8] sm:$0xf]
    %v263 = vld [vmem:[#allocation5 + $0xc] sm:$0xf]
    %v264 = vld [vmem:[#allocation5 + $0x10] sm:$0xf]
    %v265 = vld [vmem:[#allocation5 + $0x14] sm:$0xf]
    %v266 = vld [vmem:[#allocation5 + $0x18] sm:$0xf]
    %v267 = vld [vmem:[#allocation5 + $0x1c] sm:$0xf]
    %v268 = vld [vmem:[#allocation5 + $0x20] sm:$0xf]
    %v269 = vld [vmem:[#allocation5 + $0x24] sm:$0xf]
    %v270 = vld [vmem:[#allocation5 + $0x28] sm:$0xf]
    %v271 = vld [vmem:[#allocation5 + $0x2c] sm:$0xf]
    %v272 = vld [vmem:[#allocation5 + $0x30] sm:$0xf]
    %v273 = vld [vmem:[#allocation5 + $0x34] sm:$0xf]
    %v274 = vld [vmem:[#allocation5 + $0x38] sm:$0xf]
    %v275 = vld [vmem:[#allocation5 + $0x3c] sm:$0xf]
    %v292 = vunpack.c.l.b16 %v260
    %v293 = vunpack.c.l.b16 %v261
    %v294 = vunpack.c.l.b16 %v262
    %v295 = vunpack.c.l.b16 %v263
    %v296 = vunpack.c.l.b16 %v264
    %v297 = vunpack.c.l.b16 %v265
    %v298 = vunpack.c.l.b16 %v266
    %v299 = vunpack.c.l.b16 %v267
    %v300 = vunpack.c.l.b16 %v268
    %v301 = vunpack.c.l.b16 %v269
    %v302 = vunpack.c.l.b16 %v270
    %v303 = vunpack.c.l.b16 %v271
    %v304 = vunpack.c.l.b16 %v272
    %v305 = vunpack.c.l.b16 %v273
    %v306 = vunpack.c.l.b16 %v274
    %v307 = vunpack.c.l.b16 %v275
    %v308 = vpack.c.b16 %v293, %v292
    %v309 = vpack.c.b16 %v295, %v294
    %v310 = vpack.c.b16 %v297, %v296
    %v311 = vpack.c.b16 %v299, %v298
    %v312 = vpack.c.b16 %v301, %v300
    %v313 = vpack.c.b16 %v303, %v302
    %v314 = vpack.c.b16 %v305, %v304
    %v315 = vpack.c.b16 %v307, %v306
    %324 = vmatprep.subr.bf16.mxu0 0
    %325 = vmatpush1.bf16.msra.mxu0 %v315
    %326 = vmatprep.subr.bf16.mxu0 0
    %327 = vmatpush1.bf16.msra.mxu0 %v314
    %328 = vmatprep.subr.bf16.mxu0 0
    %329 = vmatpush1.bf16.msra.mxu0 %v313
    %330 = vmatprep.subr.bf16.mxu0 0
    %331 = vmatpush1.bf16.msra.mxu0 %v312
    %332 = vmatprep.subr.bf16.mxu0 0
    %333 = vmatpush1.bf16.msra.mxu0 %v311
    %334 = vmatprep.subr.bf16.mxu0 0
    %335 = vmatpush1.bf16.msra.mxu0 %v310
    %336 = vmatprep.subr.bf16.mxu0 0
    %337 = vmatpush1.bf16.msra.mxu0 %v309
    %338 = vmatprep.subr.bf16.mxu0 0
    %339 = vmatpush1.bf16.msra.mxu0 %v308
    %340 = vmatprep.subr.bf16.mxu0 0
    %341 = vmatpush2.bf16.msra.mxu0 0
    %342 = vmatprep.subr.bf16.mxu0 0
    %343 = vmatpush2.bf16.msra.mxu0 0
    %344 = vmatprep.subr.bf16.mxu0 0
    %345 = vmatpush2.bf16.msra.mxu0 0
    %346 = vmatprep.subr.bf16.mxu0 0
    %347 = vmatpush2.bf16.msra.mxu0 0
    %348 = vmatprep.subr.bf16.mxu0 0
    %349 = vmatpush2.bf16.msra.mxu0 0
    %350 = vmatprep.subr.bf16.mxu0 0
    %351 = vmatpush2.bf16.msra.mxu0 0
    %352 = vmatprep.subr.bf16.mxu0 0
    %353 = vmatpush2.bf16.msra.mxu0 0
    %354 = vmatprep.subr.bf16.mxu0 0
    %355 = vmatpush2.bf16.msra.mxu0 0
    %356 = vmatprep.mubr.bf16.mxu0 0
    %357 = vmatmul.mubr.bf16.gmra.mxu0 %v138
    %v358 = vpop.f32.mrf.mxu0
    %v359 = vadd.f32 0.0, %v358
    %v360 = vpop.f32.mrf.mxu0
    %v361 = vpop.f32.mrf.mxu0
    %v362 = vadd.f32 0.0, %v361
    %v363 = vpop.f32.mrf.mxu0
    %364 = vmatprep.mubr.bf16.mxu0 0
    %365 = vmatmul.mubr.bf16.gmra.mxu0 %v139
    %v366 = vpop.f32.mrf.mxu0
    %v367 = vadd.f32 0.0, %v366
    %v368 = vpop.f32.mrf.mxu0
    %v369 = vpop.f32.mrf.mxu0
    %v370 = vadd.f32 0.0, %v369
    %v371 = vpop.f32.mrf.mxu0
    %372 = vdwg.mxu0
    %v373 = vld [vmem:[#allocation7] sm:$0xf]
    %v374 = vld [vmem:[#allocation7 + $0x4] sm:$0xf]
    %v375 = vld [vmem:[#allocation7 + $0x8] sm:$0xf]
    %v376 = vld [vmem:[#allocation7 + $0xc] sm:$0xf]
    %v377 = vld [vmem:[#allocation7 + $0x10] sm:$0xf]
    %v378 = vld [vmem:[#allocation7 + $0x14] sm:$0xf]
    %v379 = vld [vmem:[#allocation7 + $0x18] sm:$0xf]
    %v380 = vld [vmem:[#allocation7 + $0x1c] sm:$0xf]
    %v381 = vld [vmem:[#allocation7 + $0x20] sm:$0xf]
    %v382 = vld [vmem:[#allocation7 + $0x24] sm:$0xf]
    %v383 = vld [vmem:[#allocation7 + $0x28] sm:$0xf]
    %v384 = vld [vmem:[#allocation7 + $0x2c] sm:$0xf]
    %v385 = vld [vmem:[#allocation7 + $0x30] sm:$0xf]
    %v386 = vld [vmem:[#allocation7 + $0x34] sm:$0xf]
    %v387 = vld [vmem:[#allocation7 + $0x38] sm:$0xf]
    %v388 = vld [vmem:[#allocation7 + $0x3c] sm:$0xf]
    %v389 = vld [vmem:[%s5] sm:$0x1]
    %v391 = vlaneseq
    %v392 = vshrl.u32 %v391, 7
    %v393 = vsub.s32 0, %v392
    %v394 = vrot.slane %v389, %v393
    %v412 = vunpack.c.l.b16 %v373
    %v413 = vunpack.c.l.b16 %v374
    %v414 = vunpack.c.l.b16 %v375
    %v415 = vunpack.c.l.b16 %v376
    %v416 = vunpack.c.l.b16 %v377
    %v417 = vunpack.c.l.b16 %v378
    %v418 = vunpack.c.l.b16 %v379
    %v419 = vunpack.c.l.b16 %v380
    %v420 = vunpack.c.l.b16 %v381
    %v421 = vunpack.c.l.b16 %v382
    %v422 = vunpack.c.l.b16 %v383
    %v423 = vunpack.c.l.b16 %v384
    %v424 = vunpack.c.l.b16 %v385
    %v425 = vunpack.c.l.b16 %v386
    %v426 = vunpack.c.l.b16 %v387
    %v427 = vunpack.c.l.b16 %v388
    %v428 = vpack.c.b16 %v413, %v412
    %v429 = vpack.c.b16 %v415, %v414
    %v430 = vpack.c.b16 %v417, %v416
    %v431 = vpack.c.b16 %v419, %v418
    %v432 = vpack.c.b16 %v421, %v420
    %v433 = vpack.c.b16 %v423, %v422
    %v434 = vpack.c.b16 %v425, %v424
    %v435 = vpack.c.b16 %v427, %v426
    %444 = vmatprep.subr.bf16.mxu0 0
    %445 = vmatpush1.bf16.msra.mxu0 %v435
    %446 = vmatprep.subr.bf16.mxu0 0
    %447 = vmatpush1.bf16.msra.mxu0 %v434
    %448 = vmatprep.subr.bf16.mxu0 0
    %449 = vmatpush1.bf16.msra.mxu0 %v433
    %450 = vmatprep.subr.bf16.mxu0 0
    %451 = vmatpush1.bf16.msra.mxu0 %v432
    %452 = vmatprep.subr.bf16.mxu0 0
    %453 = vmatpush1.bf16.msra.mxu0 %v431
    %454 = vmatprep.subr.bf16.mxu0 0
    %455 = vmatpush1.bf16.msra.mxu0 %v430
    %456 = vmatprep.subr.bf16.mxu0 0
    %457 = vmatpush1.bf16.msra.mxu0 %v429
    %458 = vmatprep.subr.bf16.mxu0 0
    %459 = vmatpush1.bf16.msra.mxu0 %v428
    %460 = vmatprep.subr.bf16.mxu0 0
    %461 = vmatpush2.bf16.msra.mxu0 0
    %462 = vmatprep.subr.bf16.mxu0 0
    %463 = vmatpush2.bf16.msra.mxu0 0
    %464 = vmatprep.subr.bf16.mxu0 0
    %465 = vmatpush2.bf16.msra.mxu0 0
    %466 = vmatprep.subr.bf16.mxu0 0
    %467 = vmatpush2.bf16.msra.mxu0 0
    %468 = vmatprep.subr.bf16.mxu0 0
    %469 = vmatpush2.bf16.msra.mxu0 0
    %470 = vmatprep.subr.bf16.mxu0 0
    %471 = vmatpush2.bf16.msra.mxu0 0
    %472 = vmatprep.subr.bf16.mxu0 0
    %473 = vmatpush2.bf16.msra.mxu0 0
    %474 = vmatprep.subr.bf16.mxu0 0
    %475 = vmatpush2.bf16.msra.mxu0 0
    %476 = vmatprep.mubr.bf16.mxu0 0
    %477 = vmatmul.mubr.bf16.gmra.mxu0 %v138
    %v478 = vpop.f32.mrf.mxu0
    %v479 = vadd.f32 %v394, %v478
    %v480 = vpop.f32.mrf.mxu0
    %v481 = vpop.f32.mrf.mxu0
    %v482 = vadd.f32 %v394, %v481
    %v483 = vpop.f32.mrf.mxu0
    %484 = vmatprep.mubr.bf16.mxu0 0
    %485 = vmatmul.mubr.bf16.gmra.mxu0 %v139
    %v486 = vpop.f32.mrf.mxu0
    %v487 = vadd.f32 %v394, %v486
    %v488 = vpop.f32.mrf.mxu0
    %v489 = vpop.f32.mrf.mxu0
    %v490 = vadd.f32 %v394, %v489
    %v491 = vpop.f32.mrf.mxu0
    %492 = vdwg.mxu0
    %v493 = vld [vmem:[#allocation11] sm:$0xff]
    %v494 = vld [vmem:[#allocation11 + $0x8] sm:$0xff]
    %v495 = vld [vmem:[#allocation11 + $0x10] sm:$0xff]
    %v496 = vld [vmem:[#allocation11 + $0x18] sm:$0xff]
    %vm497 = vcmask 261120
    %v499 = vsel %vm497, %v246, 0
    %v502 = vsel %vm497, %v249, 0
    %v505 = vsel %vm497, %v254, 0
    %v508 = vsel %vm497, %v257, 0
    %v511 = vsel %vm497, %v359, 0
    %v514 = vsel %vm497, %v362, 0
    %v517 = vsel %vm497, %v367, 0
    %v520 = vsel %vm497, %v370, 0
    %522 = vmatprep.subr.mxu0 0.0
    %523 = vmatpush1.xpose.msra.mxu0 0.0
    %524 = vmatprep.subr.mxu0 0.0
    %525 = vmatpush1.xpose.msra.mxu0 0.0
    %526 = vmatprep.subr.mxu0 0.0
    %527 = vmatpush1.xpose.msra.mxu0 0.0
    %528 = vmatprep.subr.mxu0 0.0
    %529 = vmatpush1.xpose.msra.mxu0 0.0
    %530 = vmatprep.subr.mxu0 0.0
    %531 = vmatpush1.xpose.msra.mxu0 0.0
    %532 = vmatprep.subr.mxu0 0.0
    %533 = vmatpush1.xpose.msra.mxu0 0.0
    %534 = vmatprep.subr.mxu0 0.0
    %535 = vmatpush1.xpose.msra.mxu0 0.0
    %536 = vmatprep.subr.mxu0 0.0
    %537 = vmatpush1.xpose.msra.mxu0 0.0
    %538 = vmatprep.subr.mxu0 0.0
    %539 = vmatpush1.xpose.msra.mxu0 0.0
    %540 = vmatprep.subr.mxu0 0.0
    %541 = vmatpush1.xpose.msra.mxu0 0.0
    %542 = vmatprep.subr.mxu0 0.0
    %543 = vmatpush1.xpose.msra.mxu0 0.0
    %544 = vmatprep.subr.mxu0 0.0
    %545 = vmatpush1.xpose.msra.mxu0 0.0
    %546 = vmatprep.subr.mxu0 0.0
    %547 = vmatpush1.xpose.msra.mxu0 %v520
    %548 = vmatprep.subr.mxu0 0.0
    %549 = vmatpush1.xpose.msra.mxu0 %v517
    %550 = vmatprep.subr.mxu0 0.0
    %551 = vmatpush1.xpose.msra.mxu0 %v514
    %552 = vmatprep.subr.mxu0 0.0
    %553 = vmatpush1.xpose.msra.mxu0 %v511
    %554 = vmatprep.subr.mxu0 0.0
    %555 = vmatpush2.xpose.msra.mxu0 0.0
    %556 = vmatprep.subr.mxu0 0.0
    %557 = vmatpush2.xpose.msra.mxu0 0.0
    %558 = vmatprep.subr.mxu0 0.0
    %559 = vmatpush2.xpose.msra.mxu0 0.0
    %560 = vmatprep.subr.mxu0 0.0
    %561 = vmatpush2.xpose.msra.mxu0 0.0
    %562 = vmatprep.subr.mxu0 0.0
    %563 = vmatpush2.xpose.msra.mxu0 0.0
    %564 = vmatprep.subr.mxu0 0.0
    %565 = vmatpush2.xpose.msra.mxu0 0.0
    %566 = vmatprep.subr.mxu0 0.0
    %567 = vmatpush2.xpose.msra.mxu0 0.0
    %568 = vmatprep.subr.mxu0 0.0
    %569 = vmatpush2.xpose.msra.mxu0 0.0
    %570 = vmatprep.subr.mxu0 0.0
    %571 = vmatpush2.xpose.msra.mxu0 0.0
    %572 = vmatprep.subr.mxu0 0.0
    %573 = vmatpush2.xpose.msra.mxu0 0.0
    %574 = vmatprep.subr.mxu0 0.0
    %575 = vmatpush2.xpose.msra.mxu0 0.0
    %576 = vmatprep.subr.mxu0 0.0
    %577 = vmatpush2.xpose.msra.mxu0 0.0
    %578 = vmatprep.subr.mxu0 0.0
    %579 = vmatpush2.xpose.msra.mxu0 0.0
    %580 = vmatprep.subr.mxu0 0.0
    %581 = vmatpush2.xpose.msra.mxu0 0.0
    %582 = vmatprep.subr.mxu0 0.0
    %583 = vmatpush2.xpose.msra.mxu0 0.0
    %584 = vmatprep.subr.mxu0 0.0
    %585 = vmatpush2.xpose.msra.mxu0 0.0
    %586 = vmatprep.mubr.f32.mxu0 0.0
    %587 = vmatmul.mubr.f32.gmra.mxu0 %v499
    %v588 = vpop.f32.mrf.mxu0
    %v589 = vadd.f32 %v493, %v588
    %v590 = vpop.f32.mrf.mxu0
    %591 = vmatprep.mubr.f32.mxu0 0.0
    %592 = vmatmul.mubr.f32.gmra.mxu0 %v502
    %v593 = vpop.f32.mrf.mxu0
    %v594 = vadd.f32 %v494, %v593
    %v595 = vpop.f32.mrf.mxu0
    %596 = vmatprep.mubr.f32.mxu0 0.0
    %597 = vmatmul.mubr.f32.gmra.mxu0 %v505
    %v598 = vpop.f32.mrf.mxu0
    %v599 = vadd.f32 %v495, %v598
    %v600 = vpop.f32.mrf.mxu0
    %601 = vmatprep.mubr.f32.mxu0 0.0
    %602 = vmatmul.mubr.f32.gmra.mxu0 %v508
    %v603 = vpop.f32.mrf.mxu0
    %v604 = vadd.f32 %v496, %v603
    %v605 = vpop.f32.mrf.mxu0
    %606 = vdwg.mxu0
    %v607 = vsel %vm497, %v589, -inf
    %608 = vmax.xlane.f32.xlu0 %v607
    %v609 = vpop.xlane.xlu0 %608
    %v610 = vsel %vm497, %v594, -inf
    %611 = vmax.xlane.f32.xlu0 %v610
    %v612 = vpop.xlane.xlu0 %611
    %v613 = vsel %vm497, %v599, -inf
    %614 = vmax.xlane.f32.xlu0 %v613
    %v615 = vpop.xlane.xlu0 %614
    %v616 = vsel %vm497, %v604, -inf
    %617 = vmax.xlane.f32.xlu0 %v616
    %v618 = vpop.xlane.xlu0 %617
    %v619 = vsub.f32 %v589, %v609
    %v620 = vsub.f32 %v594, %v612
    %v621 = vsub.f32 %v599, %v615
    %v622 = vsub.f32 %v604, %v618
    %v623 = vmul.f32 %v619, 1.442695
    %v624 = vpow.pop %v623
    %v625 = vmul.f32 %v620, 1.442695
    %v626 = vpow.pop %v625
    %v627 = vmul.f32 %v621, 1.442695
    %v628 = vpow.pop %v627
    %v629 = vmul.f32 %v622, 1.442695
    %v630 = vpow.pop %v629
    %v631 = vsel %vm497, %v624, 0.0
    %632 = vadd.xlane.f32.xlu0 %v631
    %v633 = vpop.xlane.xlu0 %632
    %v634 = vsel %vm497, %v626, 0.0
    %635 = vadd.xlane.f32.xlu0 %v634
    %v636 = vpop.xlane.xlu0 %635
    %v637 = vsel %vm497, %v628, 0.0
    %638 = vadd.xlane.f32.xlu0 %v637
    %v639 = vpop.xlane.xlu0 %638
    %v640 = vsel %vm497, %v630, 0.0
    %641 = vadd.xlane.f32.xlu0 %v640
    %v642 = vpop.xlane.xlu0 %641
    %v643 = vrcp.pop %v633
    %v644 = vmul.f32 %v624, %v643
    %v645 = vrcp.pop %v636
    %v646 = vmul.f32 %v626, %v645
    %v647 = vrcp.pop %v639
    %v648 = vmul.f32 %v628, %v647
    %v649 = vrcp.pop %v642
    %v650 = vmul.f32 %v630, %v649
    %v652 = vsel %vm497, %v644, 0
    %v655 = vsel %vm497, %v646, 0
    %v658 = vsel %vm497, %v648, 0
    %v661 = vsel %vm497, %v650, 0
    %663 = vmatprep.subr.mxu0 0.0
    %664 = vmatpush1.msra.mxu0 0.0
    %665 = vmatprep.subr.mxu0 0.0
    %666 = vmatpush1.msra.mxu0 0.0
    %667 = vmatprep.subr.mxu0 0.0
    %668 = vmatpush1.msra.mxu0 0.0
    %669 = vmatprep.subr.mxu0 0.0
    %670 = vmatpush1.msra.mxu0 0.0
    %671 = vmatprep.subr.mxu0 0.0
    %672 = vmatpush1.msra.mxu0 0.0
    %673 = vmatprep.subr.mxu0 0.0
    %674 = vmatpush1.msra.mxu0 0.0
    %675 = vmatprep.subr.mxu0 0.0
    %676 = vmatpush1.msra.mxu0 0.0
    %677 = vmatprep.subr.mxu0 0.0
    %678 = vmatpush1.msra.mxu0 0.0
    %679 = vmatprep.subr.mxu0 0.0
    %680 = vmatpush1.msra.mxu0 0.0
    %681 = vmatprep.subr.mxu0 0.0
    %682 = vmatpush1.msra.mxu0 0.0
    %683 = vmatprep.subr.mxu0 0.0
    %684 = vmatpush1.msra.mxu0 0.0
    %685 = vmatprep.subr.mxu0 0.0
    %686 = vmatpush1.msra.mxu0 0.0
    %687 = vmatprep.subr.mxu0 0.0
    %688 = vmatpush1.msra.mxu0 %v490
    %689 = vmatprep.subr.mxu0 0.0
    %690 = vmatpush1.msra.mxu0 %v487
    %691 = vmatprep.subr.mxu0 0.0
    %692 = vmatpush1.msra.mxu0 %v482
    %693 = vmatprep.subr.mxu0 0.0
    %694 = vmatpush1.msra.mxu0 %v479
    %695 = vmatprep.subr.mxu0 0.0
    %696 = vmatpush2.msra.mxu0 0.0
    %697 = vmatprep.subr.mxu0 0.0
    %698 = vmatpush2.msra.mxu0 0.0
    %699 = vmatprep.subr.mxu0 0.0
    %700 = vmatpush2.msra.mxu0 0.0
    %701 = vmatprep.subr.mxu0 0.0
    %702 = vmatpush2.msra.mxu0 0.0
    %703 = vmatprep.subr.mxu0 0.0
    %704 = vmatpush2.msra.mxu0 0.0
    %705 = vmatprep.subr.mxu0 0.0
    %706 = vmatpush2.msra.mxu0 0.0
    %707 = vmatprep.subr.mxu0 0.0
    %708 = vmatpush2.msra.mxu0 0.0
    %709 = vmatprep.subr.mxu0 0.0
    %710 = vmatpush2.msra.mxu0 0.0
    %711 = vmatprep.subr.mxu0 0.0
    %712 = vmatpush2.msra.mxu0 0.0
    %713 = vmatprep.subr.mxu0 0.0
    %714 = vmatpush2.msra.mxu0 0.0
    %715 = vmatprep.subr.mxu0 0.0
    %716 = vmatpush2.msra.mxu0 0.0
    %717 = vmatprep.subr.mxu0 0.0
    %718 = vmatpush2.msra.mxu0 0.0
    %719 = vmatprep.subr.mxu0 0.0
    %720 = vmatpush2.msra.mxu0 0.0
    %721 = vmatprep.subr.mxu0 0.0
    %722 = vmatpush2.msra.mxu0 0.0
    %723 = vmatprep.subr.mxu0 0.0
    %724 = vmatpush2.msra.mxu0 0.0
    %725 = vmatprep.subr.mxu0 0.0
    %726 = vmatpush2.msra.mxu0 0.0
    %727 = vmatprep.mubr.f32.mxu0 0.0
    %728 = vmatmul.mubr.f32.gmra.mxu0 %v652
    %v729 = vpop.f32.mrf.mxu0
    %v730 = vadd.f32 0.0, %v729
    %v731 = vpop.f32.mrf.mxu0
    %732 = vmatprep.mubr.f32.mxu0 0.0
    %733 = vmatmul.mubr.f32.gmra.mxu0 %v655
    %v734 = vpop.f32.mrf.mxu0
    %v735 = vadd.f32 0.0, %v734
    %v736 = vpop.f32.mrf.mxu0
    %737 = vmatprep.mubr.f32.mxu0 0.0
    %738 = vmatmul.mubr.f32.gmra.mxu0 %v658
    %v739 = vpop.f32.mrf.mxu0
    %v740 = vadd.f32 0.0, %v739
    %v741 = vpop.f32.mrf.mxu0
    %742 = vmatprep.mubr.f32.mxu0 0.0
    %743 = vmatmul.mubr.f32.gmra.mxu0 %v661
    %v744 = vpop.f32.mrf.mxu0
    %v745 = vadd.f32 0.0, %v744
    %v746 = vpop.f32.mrf.mxu0
    %747 = vdwg.mxu0
    %v748 = vpack.c.bf16 %v735, %v730
    %v749 = vpack.c.bf16 %v745, %v740
    %v750 = vld [vmem:[#allocation8] sm:$0xf]
    %v751 = vld [vmem:[#allocation8 + $0x4] sm:$0xf]
    %v752 = vld [vmem:[#allocation8 + $0x8] sm:$0xf]
    %v753 = vld [vmem:[#allocation8 + $0xc] sm:$0xf]
    %754 = vrot.lane.b32.xlu0 %v246, 96
    %v755 = vpop.permute.xlu0 %754
    %756 = vrot.lane.b32.xlu0 %v249, 96
    %v757 = vpop.permute.xlu0 %756
    %758 = vrot.lane.b32.xlu0 %v254, 96
    %v759 = vpop.permute.xlu0 %758
    %760 = vrot.lane.b32.xlu0 %v257, 96
    %v761 = vpop.permute.xlu0 %760
    %762 = vrot.lane.b32.xlu0 %v359, 96
    %v763 = vpop.permute.xlu0 %762
    %764 = vrot.lane.b32.xlu0 %v362, 96
    %v765 = vpop.permute.xlu0 %764
    %766 = vrot.lane.b32.xlu0 %v367, 96
    %v767 = vpop.permute.xlu0 %766
    %768 = vrot.lane.b32.xlu0 %v370, 96
    %v769 = vpop.permute.xlu0 %768
    %v770 = vsel %vm497, %v755, 0
    %v772 = vsel %vm497, %v757, 0
    %v774 = vsel %vm497, %v759, 0
    %v776 = vsel %vm497, %v761, 0
    %v778 = vsel %vm497, %v763, 0
    %v780 = vsel %vm497, %v765, 0
    %v782 = vsel %vm497, %v767, 0
    %v784 = vsel %vm497, %v769, 0
    %786 = vmatprep.subr.mxu0 0.0
    %787 = vmatpush1.xpose.msra.mxu0 0.0
    %788 = vmatprep.subr.mxu0 0.0
    %789 = vmatpush1.xpose.msra.mxu0 0.0
    %790 = vmatprep.subr.mxu0 0.0
    %791 = vmatpush1.xpose.msra.mxu0 0.0
    %792 = vmatprep.subr.mxu0 0.0
    %793 = vmatpush1.xpose.msra.mxu0 0.0
    %794 = vmatprep.subr.mxu0 0.0
    %795 = vmatpush1.xpose.msra.mxu0 0.0
    %796 = vmatprep.subr.mxu0 0.0
    %797 = vmatpush1.xpose.msra.mxu0 0.0
    %798 = vmatprep.subr.mxu0 0.0
    %799 = vmatpush1.xpose.msra.mxu0 0.0
    %800 = vmatprep.subr.mxu0 0.0
    %801 = vmatpush1.xpose.msra.mxu0 0.0
    %802 = vmatprep.subr.mxu0 0.0
    %803 = vmatpush1.xpose.msra.mxu0 0.0
    %804 = vmatprep.subr.mxu0 0.0
    %805 = vmatpush1.xpose.msra.mxu0 0.0
    %806 = vmatprep.subr.mxu0 0.0
    %807 = vmatpush1.xpose.msra.mxu0 0.0
    %808 = vmatprep.subr.mxu0 0.0
    %809 = vmatpush1.xpose.msra.mxu0 0.0
    %810 = vmatprep.subr.mxu0 0.0
    %811 = vmatpush1.xpose.msra.mxu0 %v784
    %812 = vmatprep.subr.mxu0 0.0
    %813 = vmatpush1.xpose.msra.mxu0 %v782
    %814 = vmatprep.subr.mxu0 0.0
    %815 = vmatpush1.xpose.msra.mxu0 %v780
    %816 = vmatprep.subr.mxu0 0.0
    %817 = vmatpush1.xpose.msra.mxu0 %v778
    %818 = vmatprep.subr.mxu0 0.0
    %819 = vmatpush2.xpose.msra.mxu0 0.0
    %820 = vmatprep.subr.mxu0 0.0
    %821 = vmatpush2.xpose.msra.mxu0 0.0
    %822 = vmatprep.subr.mxu0 0.0
    %823 = vmatpush2.xpose.msra.mxu0 0.0
    %824 = vmatprep.subr.mxu0 0.0
    %825 = vmatpush2.xpose.msra.mxu0 0.0
    %826 = vmatprep.subr.mxu0 0.0
    %827 = vmatpush2.xpose.msra.mxu0 0.0
    %828 = vmatprep.subr.mxu0 0.0
    %829 = vmatpush2.xpose.msra.mxu0 0.0
    %830 = vmatprep.subr.mxu0 0.0
    %831 = vmatpush2.xpose.msra.mxu0 0.0
    %832 = vmatprep.subr.mxu0 0.0
    %833 = vmatpush2.xpose.msra.mxu0 0.0
    %834 = vmatprep.subr.mxu0 0.0
    %835 = vmatpush2.xpose.msra.mxu0 0.0
    %836 = vmatprep.subr.mxu0 0.0
    %837 = vmatpush2.xpose.msra.mxu0 0.0
    %838 = vmatprep.subr.mxu0 0.0
    %839 = vmatpush2.xpose.msra.mxu0 0.0
    %840 = vmatprep.subr.mxu0 0.0
    %841 = vmatpush2.xpose.msra.mxu0 0.0
    %842 = vmatprep.subr.mxu0 0.0
    %843 = vmatpush2.xpose.msra.mxu0 0.0
    %844 = vmatprep.subr.mxu0 0.0
    %845 = vmatpush2.xpose.msra.mxu0 0.0
    %846 = vmatprep.subr.mxu0 0.0
    %847 = vmatpush2.xpose.msra.mxu0 0.0
    %848 = vmatprep.subr.mxu0 0.0
    %849 = vmatpush2.xpose.msra.mxu0 0.0
    %850 = vmatprep.mubr.f32.mxu0 0.0
    %851 = vmatmul.mubr.f32.gmra.mxu0 %v770
    %v852 = vpop.f32.mrf.mxu0
    %v853 = vadd.f32 %v493, %v852
    %v854 = vpop.f32.mrf.mxu0
    %855 = vmatprep.mubr.f32.mxu0 0.0
    %856 = vmatmul.mubr.f32.gmra.mxu0 %v772
    %v857 = vpop.f32.mrf.mxu0
    %v858 = vadd.f32 %v494, %v857
    %v859 = vpop.f32.mrf.mxu0
    %860 = vmatprep.mubr.f32.mxu0 0.0
    %861 = vmatmul.mubr.f32.gmra.mxu0 %v774
    %v862 = vpop.f32.mrf.mxu0
    %v863 = vadd.f32 %v495, %v862
    %v864 = vpop.f32.mrf.mxu0
    %865 = vmatprep.mubr.f32.mxu0 0.0
    %866 = vmatmul.mubr.f32.gmra.mxu0 %v776
    %v867 = vpop.f32.mrf.mxu0
    %v868 = vadd.f32 %v496, %v867
    %v869 = vpop.f32.mrf.mxu0
    %870 = vdwg.mxu0
    %v871 = vsel %vm497, %v853, -inf
    %872 = vmax.xlane.f32.xlu0 %v871
    %v873 = vpop.xlane.xlu0 %872
    %v874 = vsel %vm497, %v858, -inf
    %875 = vmax.xlane.f32.xlu0 %v874
    %v876 = vpop.xlane.xlu0 %875
    %v877 = vsel %vm497, %v863, -inf
    %878 = vmax.xlane.f32.xlu0 %v877
    %v879 = vpop.xlane.xlu0 %878
    %v880 = vsel %vm497, %v868, -inf
    %881 = vmax.xlane.f32.xlu0 %v880
    %v882 = vpop.xlane.xlu0 %881
    %v883 = vsub.f32 %v853, %v873
    %v884 = vsub.f32 %v858, %v876
    %v885 = vsub.f32 %v863, %v879
    %v886 = vsub.f32 %v868, %v882
    %v887 = vmul.f32 %v883, 1.442695
    %v888 = vpow.pop %v887
    %v889 = vmul.f32 %v884, 1.442695
    %v890 = vpow.pop %v889
    %v891 = vmul.f32 %v885, 1.442695
    %v892 = vpow.pop %v891
    %v893 = vmul.f32 %v886, 1.442695
    %v894 = vpow.pop %v893
    %v895 = vsel %vm497, %v888, 0.0
    %896 = vadd.xlane.f32.xlu0 %v895
    %v897 = vpop.xlane.xlu0 %896
    %v898 = vsel %vm497, %v890, 0.0
    %899 = vadd.xlane.f32.xlu0 %v898
    %v900 = vpop.xlane.xlu0 %899
    %v901 = vsel %vm497, %v892, 0.0
    %902 = vadd.xlane.f32.xlu0 %v901
    %v903 = vpop.xlane.xlu0 %902
    %v904 = vsel %vm497, %v894, 0.0
    %905 = vadd.xlane.f32.xlu0 %v904
    %v906 = vpop.xlane.xlu0 %905
    %v907 = vrcp.pop %v897
    %v908 = vmul.f32 %v888, %v907
    %v909 = vrcp.pop %v900
    %v910 = vmul.f32 %v890, %v909
    %v911 = vrcp.pop %v903
    %v912 = vmul.f32 %v892, %v911
    %v913 = vrcp.pop %v906
    %v914 = vmul.f32 %v894, %v913
    %919 = vrot.lane.b32.xlu0 %v479, 96
    %v920 = vpop.permute.xlu0 %919
    %921 = vrot.lane.b32.xlu0 %v482, 96
    %v922 = vpop.permute.xlu0 %921
    %923 = vrot.lane.b32.xlu0 %v487, 96
    %v924 = vpop.permute.xlu0 %923
    %925 = vrot.lane.b32.xlu0 %v490, 96
    %v926 = vpop.permute.xlu0 %925
    %v932 = vsel %vm497, %v908, 0
    %v935 = vsel %vm497, %v910, 0
    %v938 = vsel %vm497, %v912, 0
    %v941 = vsel %vm497, %v914, 0
    %943 = vmatprep.subr.mxu0 0.0
    %944 = vmatpush1.msra.mxu0 0.0
    %945 = vmatprep.subr.mxu0 0.0
    %946 = vmatpush1.msra.mxu0 0.0
    %947 = vmatprep.subr.mxu0 0.0
    %948 = vmatpush1.msra.mxu0 0.0
    %949 = vmatprep.subr.mxu0 0.0
    %950 = vmatpush1.msra.mxu0 0.0
    %951 = vmatprep.subr.mxu0 0.0
    %952 = vmatpush1.msra.mxu0 0.0
    %953 = vmatprep.subr.mxu0 0.0
    %954 = vmatpush1.msra.mxu0 0.0
    %955 = vmatprep.subr.mxu0 0.0
    %956 = vmatpush1.msra.mxu0 0.0
    %957 = vmatprep.subr.mxu0 0.0
    %958 = vmatpush1.msra.mxu0 0.0
    %959 = vmatprep.subr.mxu0 0.0
    %960 = vmatpush1.msra.mxu0 0.0
    %961 = vmatprep.subr.mxu0 0.0
    %962 = vmatpush1.msra.mxu0 0.0
    %963 = vmatprep.subr.mxu0 0.0
    %964 = vmatpush1.msra.mxu0 0.0
    %965 = vmatprep.subr.mxu0 0.0
    %966 = vmatpush1.msra.mxu0 0.0
    %967 = vmatprep.subr.mxu0 0.0
    %968 = vmatpush1.msra.mxu0 %v926
    %969 = vmatprep.subr.mxu0 0.0
    %970 = vmatpush1.msra.mxu0 %v924
    %971 = vmatprep.subr.mxu0 0.0
    %972 = vmatpush1.msra.mxu0 %v922
    %973 = vmatprep.subr.mxu0 0.0
    %974 = vmatpush1.msra.mxu0 %v920
    %975 = vmatprep.subr.mxu0 0.0
    %976 = vmatpush2.msra.mxu0 0.0
    %977 = vmatprep.subr.mxu0 0.0
    %978 = vmatpush2.msra.mxu0 0.0
    %979 = vmatprep.subr.mxu0 0.0
    %980 = vmatpush2.msra.mxu0 0.0
    %981 = vmatprep.subr.mxu0 0.0
    %982 = vmatpush2.msra.mxu0 0.0
    %983 = vmatprep.subr.mxu0 0.0
    %984 = vmatpush2.msra.mxu0 0.0
    %985 = vmatprep.subr.mxu0 0.0
    %986 = vmatpush2.msra.mxu0 0.0
    %987 = vmatprep.subr.mxu0 0.0
    %988 = vmatpush2.msra.mxu0 0.0
    %989 = vmatprep.subr.mxu0 0.0
    %990 = vmatpush2.msra.mxu0 0.0
    %991 = vmatprep.subr.mxu0 0.0
    %992 = vmatpush2.msra.mxu0 0.0
    %993 = vmatprep.subr.mxu0 0.0
    %994 = vmatpush2.msra.mxu0 0.0
    %995 = vmatprep.subr.mxu0 0.0
    %996 = vmatpush2.msra.mxu0 0.0
    %997 = vmatprep.subr.mxu0 0.0
    %998 = vmatpush2.msra.mxu0 0.0
    %999 = vmatprep.subr.mxu0 0.0
    %1000 = vmatpush2.msra.mxu0 0.0
    %1001 = vmatprep.subr.mxu0 0.0
    %1002 = vmatpush2.msra.mxu0 0.0
    %1003 = vmatprep.subr.mxu0 0.0
    %1004 = vmatpush2.msra.mxu0 0.0
    %1005 = vmatprep.subr.mxu0 0.0
    %1006 = vmatpush2.msra.mxu0 0.0
    %1007 = vmatprep.mubr.f32.mxu0 0.0
    %1008 = vmatmul.mubr.f32.gmra.mxu0 %v932
    %v1009 = vpop.f32.mrf.mxu0
    %v1010 = vadd.f32 0.0, %v1009
    %v1011 = vpop.f32.mrf.mxu0
    %1012 = vmatprep.mubr.f32.mxu0 0.0
    %1013 = vmatmul.mubr.f32.gmra.mxu0 %v935
    %v1014 = vpop.f32.mrf.mxu0
    %v1015 = vadd.f32 0.0, %v1014
    %v1016 = vpop.f32.mrf.mxu0
    %1017 = vmatprep.mubr.f32.mxu0 0.0
    %1018 = vmatmul.mubr.f32.gmra.mxu0 %v938
    %v1019 = vpop.f32.mrf.mxu0
    %v1020 = vadd.f32 0.0, %v1019
    %v1021 = vpop.f32.mrf.mxu0
    %1022 = vmatprep.mubr.f32.mxu0 0.0
    %1023 = vmatmul.mubr.f32.gmra.mxu0 %v941
    %v1024 = vpop.f32.mrf.mxu0
    %v1025 = vadd.f32 0.0, %v1024
    %v1026 = vpop.f32.mrf.mxu0
    %1027 = vdwg.mxu0
    %v1028 = vpack.c.bf16 %v1015, %v1010
    %v1029 = vpack.c.bf16 %v1025, %v1020
    %s1030 = scalar_lea.vmem [#allocation8], 16
    %v1031 = vld [vmem:[%s1030] sm:$0xf]
    %v1032 = vld [vmem:[%s1030 + $0x4] sm:$0xf]
    %v1033 = vld [vmem:[%s1030 + $0x8] sm:$0xf]
    %v1034 = vld [vmem:[%s1030 + $0xc] sm:$0xf]
    %v1039 = vunpack.c.l.b16 %v1031
    %v1040 = vunpack.c.l.b16 %v1032
    %v1041 = vunpack.c.l.b16 %v1033
    %v1042 = vunpack.c.l.b16 %v1034
    %v1043 = vpack.c.b16 %v1040, %v1039
    %v1044 = vpack.c.b16 %v1042, %v1041
    %v1048 = vsel %vm497, %v1028, 0
    %v1051 = vsel %vm497, %v1029, 0
    %1053 = vmatprep.subr.bf16.mxu0 0
    %1054 = vmatpush1.bf16.msra.mxu0 0
    %1055 = vmatprep.subr.bf16.mxu0 0
    %1056 = vmatpush1.bf16.msra.mxu0 0
    %1057 = vmatprep.subr.bf16.mxu0 0
    %1058 = vmatpush1.bf16.msra.mxu0 0
    %1059 = vmatprep.subr.bf16.mxu0 0
    %1060 = vmatpush1.bf16.msra.mxu0 0
    %1061 = vmatprep.subr.bf16.mxu0 0
    %1062 = vmatpush1.bf16.msra.mxu0 0
    %1063 = vmatprep.subr.bf16.mxu0 0
    %1064 = vmatpush1.bf16.msra.mxu0 0
    %1065 = vmatprep.subr.bf16.mxu0 0
    %1066 = vmatpush1.bf16.msra.mxu0 %v1044
    %1067 = vmatprep.subr.bf16.mxu0 0
    %1068 = vmatpush1.bf16.msra.mxu0 %v1043
    %1069 = vmatprep.subr.bf16.mxu0 0
    %1070 = vmatpush2.bf16.msra.mxu0 0
    %1071 = vmatprep.subr.bf16.mxu0 0
    %1072 = vmatpush2.bf16.msra.mxu0 0
    %1073 = vmatprep.subr.bf16.mxu0 0
    %1074 = vmatpush2.bf16.msra.mxu0 0
    %1075 = vmatprep.subr.bf16.mxu0 0
    %1076 = vmatpush2.bf16.msra.mxu0 0
    %1077 = vmatprep.subr.bf16.mxu0 0
    %1078 = vmatpush2.bf16.msra.mxu0 0
    %1079 = vmatprep.subr.bf16.mxu0 0
    %1080 = vmatpush2.bf16.msra.mxu0 0
    %1081 = vmatprep.subr.bf16.mxu0 0
    %1082 = vmatpush2.bf16.msra.mxu0 0
    %1083 = vmatprep.subr.bf16.mxu0 0
    %1084 = vmatpush2.bf16.msra.mxu0 0
    %1085 = vmatprep.mubr.bf16.mxu0 0
    %1086 = vmatmul.mubr.bf16.gmra.mxu0 %v1048
    %v1087 = vpop.f32.mrf.mxu0
    %v1088 = vadd.f32 0.0, %v1087
    %v1089 = vpop.f32.mrf.mxu0
    %v1090 = vpop.f32.mrf.mxu0
    %v1091 = vadd.f32 0.0, %v1090
    %v1092 = vpop.f32.mrf.mxu0
    %1093 = vmatprep.mubr.bf16.mxu0 0
    %1094 = vmatmul.mubr.bf16.gmra.mxu0 %v1051
    %v1095 = vpop.f32.mrf.mxu0
    %v1096 = vadd.f32 0.0, %v1095
    %v1097 = vpop.f32.mrf.mxu0
    %v1098 = vpop.f32.mrf.mxu0
    %v1099 = vadd.f32 0.0, %v1098
    %v1100 = vpop.f32.mrf.mxu0
    %1101 = vdwg.mxu0
    %v1106 = vunpack.c.l.b16 %v750
    %v1107 = vunpack.c.l.b16 %v751
    %v1108 = vunpack.c.l.b16 %v752
    %v1109 = vunpack.c.l.b16 %v753
    %v1110 = vpack.c.b16 %v1107, %v1106
    %v1111 = vpack.c.b16 %v1109, %v1108
    %v1115 = vsel %vm497, %v748, 0
    %v1118 = vsel %vm497, %v749, 0
    %1120 = vmatprep.subr.bf16.mxu0 0
    %1121 = vmatpush1.bf16.msra.mxu0 0
    %1122 = vmatprep.subr.bf16.mxu0 0
    %1123 = vmatpush1.bf16.msra.mxu0 0
    %1124 = vmatprep.subr.bf16.mxu0 0
    %1125 = vmatpush1.bf16.msra.mxu0 0
    %1126 = vmatprep.subr.bf16.mxu0 0
    %1127 = vmatpush1.bf16.msra.mxu0 0
    %1128 = vmatprep.subr.bf16.mxu0 0
    %1129 = vmatpush1.bf16.msra.mxu0 0
    %1130 = vmatprep.subr.bf16.mxu0 0
    %1131 = vmatpush1.bf16.msra.mxu0 0
    %1132 = vmatprep.subr.bf16.mxu0 0
    %1133 = vmatpush1.bf16.msra.mxu0 %v1111
    %1134 = vmatprep.subr.bf16.mxu0 0
    %1135 = vmatpush1.bf16.msra.mxu0 %v1110
    %1136 = vmatprep.subr.bf16.mxu0 0
    %1137 = vmatpush2.bf16.msra.mxu0 0
    %1138 = vmatprep.subr.bf16.mxu0 0
    %1139 = vmatpush2.bf16.msra.mxu0 0
    %1140 = vmatprep.subr.bf16.mxu0 0
    %1141 = vmatpush2.bf16.msra.mxu0 0
    %1142 = vmatprep.subr.bf16.mxu0 0
    %1143 = vmatpush2.bf16.msra.mxu0 0
    %1144 = vmatprep.subr.bf16.mxu0 0
    %1145 = vmatpush2.bf16.msra.mxu0 0
    %1146 = vmatprep.subr.bf16.mxu0 0
    %1147 = vmatpush2.bf16.msra.mxu0 0
    %1148 = vmatprep.subr.bf16.mxu0 0
    %1149 = vmatpush2.bf16.msra.mxu0 0
    %1150 = vmatprep.subr.bf16.mxu0 0
    %1151 = vmatpush2.bf16.msra.mxu0 0
    %1152 = vmatprep.mubr.bf16.mxu0 0
    %1153 = vmatmul.mubr.bf16.gmra.mxu0 %v1115
    %v1154 = vpop.f32.mrf.mxu0
    %v1155 = vadd.f32 %v1088, %v1154
    %v1156 = vpop.f32.mrf.mxu0
    %v1157 = vpop.f32.mrf.mxu0
    %v1158 = vadd.f32 %v1091, %v1157
    %v1159 = vpop.f32.mrf.mxu0
    %1160 = vmatprep.mubr.bf16.mxu0 0
    %1161 = vmatmul.mubr.bf16.gmra.mxu0 %v1118
    %v1162 = vpop.f32.mrf.mxu0
    %v1163 = vadd.f32 %v1096, %v1162
    %v1164 = vpop.f32.mrf.mxu0
    %v1165 = vpop.f32.mrf.mxu0
    %v1166 = vadd.f32 %v1099, %v1165
    %v1167 = vpop.f32.mrf.mxu0
    %1168 = vdwg.mxu0
    %1169 = vrot.lane.b32.xlu0 %v246, 64
    %v1170 = vpop.permute.xlu0 %1169
    %1171 = vrot.lane.b32.xlu0 %v249, 64
    %v1172 = vpop.permute.xlu0 %1171
    %1173 = vrot.lane.b32.xlu0 %v254, 64
    %v1174 = vpop.permute.xlu0 %1173
    %1175 = vrot.lane.b32.xlu0 %v257, 64
    %v1176 = vpop.permute.xlu0 %1175
    %1177 = vrot.lane.b32.xlu0 %v359, 64
    %v1178 = vpop.permute.xlu0 %1177
    %1179 = vrot.lane.b32.xlu0 %v362, 64
    %v1180 = vpop.permute.xlu0 %1179
    %1181 = vrot.lane.b32.xlu0 %v367, 64
    %v1182 = vpop.permute.xlu0 %1181
    %1183 = vrot.lane.b32.xlu0 %v370, 64
    %v1184 = vpop.permute.xlu0 %1183
    %v1185 = vsel %vm497, %v1170, 0
    %v1187 = vsel %vm497, %v1172, 0
    %v1189 = vsel %vm497, %v1174, 0
    %v1191 = vsel %vm497, %v1176, 0
    %v1193 = vsel %vm497, %v1178, 0
    %v1195 = vsel %vm497, %v1180, 0
    %v1197 = vsel %vm497, %v1182, 0
    %v1199 = vsel %vm497, %v1184, 0
    %1201 = vmatprep.subr.mxu0 0.0
    %1202 = vmatpush1.xpose.msra.mxu0 0.0
    %1203 = vmatprep.subr.mxu0 0.0
    %1204 = vmatpush1.xpose.msra.mxu0 0.0
    %1205 = vmatprep.subr.mxu0 0.0
    %1206 = vmatpush1.xpose.msra.mxu0 0.0
    %1207 = vmatprep.subr.mxu0 0.0
    %1208 = vmatpush1.xpose.msra.mxu0 0.0
    %1209 = vmatprep.subr.mxu0 0.0
    %1210 = vmatpush1.xpose.msra.mxu0 0.0
    %1211 = vmatprep.subr.mxu0 0.0
    %1212 = vmatpush1.xpose.msra.mxu0 0.0
    %1213 = vmatprep.subr.mxu0 0.0
    %1214 = vmatpush1.xpose.msra.mxu0 0.0
    %1215 = vmatprep.subr.mxu0 0.0
    %1216 = vmatpush1.xpose.msra.mxu0 0.0
    %1217 = vmatprep.subr.mxu0 0.0
    %1218 = vmatpush1.xpose.msra.mxu0 0.0
    %1219 = vmatprep.subr.mxu0 0.0
    %1220 = vmatpush1.xpose.msra.mxu0 0.0
    %1221 = vmatprep.subr.mxu0 0.0
    %1222 = vmatpush1.xpose.msra.mxu0 0.0
    %1223 = vmatprep.subr.mxu0 0.0
    %1224 = vmatpush1.xpose.msra.mxu0 0.0
    %1225 = vmatprep.subr.mxu0 0.0
    %1226 = vmatpush1.xpose.msra.mxu0 %v1199
    %1227 = vmatprep.subr.mxu0 0.0
    %1228 = vmatpush1.xpose.msra.mxu0 %v1197
    %1229 = vmatprep.subr.mxu0 0.0
    %1230 = vmatpush1.xpose.msra.mxu0 %v1195
    %1231 = vmatprep.subr.mxu0 0.0
    %1232 = vmatpush1.xpose.msra.mxu0 %v1193
    %1233 = vmatprep.subr.mxu0 0.0
    %1234 = vmatpush2.xpose.msra.mxu0 0.0
    %1235 = vmatprep.subr.mxu0 0.0
    %1236 = vmatpush2.xpose.msra.mxu0 0.0
    %1237 = vmatprep.subr.mxu0 0.0
    %1238 = vmatpush2.xpose.msra.mxu0 0.0
    %1239 = vmatprep.subr.mxu0 0.0
    %1240 = vmatpush2.xpose.msra.mxu0 0.0
    %1241 = vmatprep.subr.mxu0 0.0
    %1242 = vmatpush2.xpose.msra.mxu0 0.0
    %1243 = vmatprep.subr.mxu0 0.0
    %1244 = vmatpush2.xpose.msra.mxu0 0.0
    %1245 = vmatprep.subr.mxu0 0.0
    %1246 = vmatpush2.xpose.msra.mxu0 0.0
    %1247 = vmatprep.subr.mxu0 0.0
    %1248 = vmatpush2.xpose.msra.mxu0 0.0
    %1249 = vmatprep.subr.mxu0 0.0
    %1250 = vmatpush2.xpose.msra.mxu0 0.0
    %1251 = vmatprep.subr.mxu0 0.0
    %1252 = vmatpush2.xpose.msra.mxu0 0.0
    %1253 = vmatprep.subr.mxu0 0.0
    %1254 = vmatpush2.xpose.msra.mxu0 0.0
    %1255 = vmatprep.subr.mxu0 0.0
    %1256 = vmatpush2.xpose.msra.mxu0 0.0
    %1257 = vmatprep.subr.mxu0 0.0
    %1258 = vmatpush2.xpose.msra.mxu0 0.0
    %1259 = vmatprep.subr.mxu0 0.0
    %1260 = vmatpush2.xpose.msra.mxu0 0.0
    %1261 = vmatprep.subr.mxu0 0.0
    %1262 = vmatpush2.xpose.msra.mxu0 0.0
    %1263 = vmatprep.subr.mxu0 0.0
    %1264 = vmatpush2.xpose.msra.mxu0 0.0
    %1265 = vmatprep.mubr.f32.mxu0 0.0
    %1266 = vmatmul.mubr.f32.gmra.mxu0 %v1185
    %v1267 = vpop.f32.mrf.mxu0
    %v1268 = vadd.f32 %v493, %v1267
    %v1269 = vpop.f32.mrf.mxu0
    %1270 = vmatprep.mubr.f32.mxu0 0.0
    %1271 = vmatmul.mubr.f32.gmra.mxu0 %v1187
    %v1272 = vpop.f32.mrf.mxu0
    %v1273 = vadd.f32 %v494, %v1272
    %v1274 = vpop.f32.mrf.mxu0
    %1275 = vmatprep.mubr.f32.mxu0 0.0
    %1276 = vmatmul.mubr.f32.gmra.mxu0 %v1189
    %v1277 = vpop.f32.mrf.mxu0
    %v1278 = vadd.f32 %v495, %v1277
    %v1279 = vpop.f32.mrf.mxu0
    %1280 = vmatprep.mubr.f32.mxu0 0.0
    %1281 = vmatmul.mubr.f32.gmra.mxu0 %v1191
    %v1282 = vpop.f32.mrf.mxu0
    %v1283 = vadd.f32 %v496, %v1282
    %v1284 = vpop.f32.mrf.mxu0
    %1285 = vdwg.mxu0
    %v1286 = vsel %vm497, %v1268, -inf
    %1287 = vmax.xlane.f32.xlu0 %v1286
    %v1288 = vpop.xlane.xlu0 %1287
    %v1289 = vsel %vm497, %v1273, -inf
    %1290 = vmax.xlane.f32.xlu0 %v1289
    %v1291 = vpop.xlane.xlu0 %1290
    %v1292 = vsel %vm497, %v1278, -inf
    %1293 = vmax.xlane.f32.xlu0 %v1292
    %v1294 = vpop.xlane.xlu0 %1293
    %v1295 = vsel %vm497, %v1283, -inf
    %1296 = vmax.xlane.f32.xlu0 %v1295
    %v1297 = vpop.xlane.xlu0 %1296
    %v1298 = vsub.f32 %v1268, %v1288
    %v1299 = vsub.f32 %v1273, %v1291
    %v1300 = vsub.f32 %v1278, %v1294
    %v1301 = vsub.f32 %v1283, %v1297
    %v1302 = vmul.f32 %v1298, 1.442695
    %v1303 = vpow.pop %v1302
    %v1304 = vmul.f32 %v1299, 1.442695
    %v1305 = vpow.pop %v1304
    %v1306 = vmul.f32 %v1300, 1.442695
    %v1307 = vpow.pop %v1306
    %v1308 = vmul.f32 %v1301, 1.442695
    %v1309 = vpow.pop %v1308
    %v1310 = vsel %vm497, %v1303, 0.0
    %1311 = vadd.xlane.f32.xlu0 %v1310
    %v1312 = vpop.xlane.xlu0 %1311
    %v1313 = vsel %vm497, %v1305, 0.0
    %1314 = vadd.xlane.f32.xlu0 %v1313
    %v1315 = vpop.xlane.xlu0 %1314
    %v1316 = vsel %vm497, %v1307, 0.0
    %1317 = vadd.xlane.f32.xlu0 %v1316
    %v1318 = vpop.xlane.xlu0 %1317
    %v1319 = vsel %vm497, %v1309, 0.0
    %1320 = vadd.xlane.f32.xlu0 %v1319
    %v1321 = vpop.xlane.xlu0 %1320
    %v1322 = vrcp.pop %v1312
    %v1323 = vmul.f32 %v1303, %v1322
    %v1324 = vrcp.pop %v1315
    %v1325 = vmul.f32 %v1305, %v1324
    %v1326 = vrcp.pop %v1318
    %v1327 = vmul.f32 %v1307, %v1326
    %v1328 = vrcp.pop %v1321
    %v1329 = vmul.f32 %v1309, %v1328
    %1330 = vrot.lane.b32.xlu0 %v479, 64
    %v1331 = vpop.permute.xlu0 %1330
    %1332 = vrot.lane.b32.xlu0 %v482, 64
    %v1333 = vpop.permute.xlu0 %1332
    %1334 = vrot.lane.b32.xlu0 %v487, 64
    %v1335 = vpop.permute.xlu0 %1334
    %1336 = vrot.lane.b32.xlu0 %v490, 64
    %v1337 = vpop.permute.xlu0 %1336
    %v1343 = vsel %vm497, %v1323, 0
    %v1346 = vsel %vm497, %v1325, 0
    %v1349 = vsel %vm497, %v1327, 0
    %v1352 = vsel %vm497, %v1329, 0
    %1354 = vmatprep.subr.mxu0 0.0
    %1355 = vmatpush1.msra.mxu0 0.0
    %1356 = vmatprep.subr.mxu0 0.0
    %1357 = vmatpush1.msra.mxu0 0.0
    %1358 = vmatprep.subr.mxu0 0.0
    %1359 = vmatpush1.msra.mxu0 0.0
    %1360 = vmatprep.subr.mxu0 0.0
    %1361 = vmatpush1.msra.mxu0 0.0
    %1362 = vmatprep.subr.mxu0 0.0
    %1363 = vmatpush1.msra.mxu0 0.0
    %1364 = vmatprep.subr.mxu0 0.0
    %1365 = vmatpush1.msra.mxu0 0.0
    %1366 = vmatprep.subr.mxu0 0.0
    %1367 = vmatpush1.msra.mxu0 0.0
    %1368 = vmatprep.subr.mxu0 0.0
    %1369 = vmatpush1.msra.mxu0 0.0
    %1370 = vmatprep.subr.mxu0 0.0
    %1371 = vmatpush1.msra.mxu0 0.0
    %1372 = vmatprep.subr.mxu0 0.0
    %1373 = vmatpush1.msra.mxu0 0.0
    %1374 = vmatprep.subr.mxu0 0.0
    %1375 = vmatpush1.msra.mxu0 0.0
    %1376 = vmatprep.subr.mxu0 0.0
    %1377 = vmatpush1.msra.mxu0 0.0
    %1378 = vmatprep.subr.mxu0 0.0
    %1379 = vmatpush1.msra.mxu0 %v1337
    %1380 = vmatprep.subr.mxu0 0.0
    %1381 = vmatpush1.msra.mxu0 %v1335
    %1382 = vmatprep.subr.mxu0 0.0
    %1383 = vmatpush1.msra.mxu0 %v1333
    %1384 = vmatprep.subr.mxu0 0.0
    %1385 = vmatpush1.msra.mxu0 %v1331
    %1386 = vmatprep.subr.mxu0 0.0
    %1387 = vmatpush2.msra.mxu0 0.0
    %1388 = vmatprep.subr.mxu0 0.0
    %1389 = vmatpush2.msra.mxu0 0.0
    %1390 = vmatprep.subr.mxu0 0.0
    %1391 = vmatpush2.msra.mxu0 0.0
    %1392 = vmatprep.subr.mxu0 0.0
    %1393 = vmatpush2.msra.mxu0 0.0
    %1394 = vmatprep.subr.mxu0 0.0
    %1395 = vmatpush2.msra.mxu0 0.0
    %1396 = vmatprep.subr.mxu0 0.0
    %1397 = vmatpush2.msra.mxu0 0.0
    %1398 = vmatprep.subr.mxu0 0.0
    %1399 = vmatpush2.msra.mxu0 0.0
    %1400 = vmatprep.subr.mxu0 0.0
    %1401 = vmatpush2.msra.mxu0 0.0
    %1402 = vmatprep.subr.mxu0 0.0
    %1403 = vmatpush2.msra.mxu0 0.0
    %1404 = vmatprep.subr.mxu0 0.0
    %1405 = vmatpush2.msra.mxu0 0.0
    %1406 = vmatprep.subr.mxu0 0.0
    %1407 = vmatpush2.msra.mxu0 0.0
    %1408 = vmatprep.subr.mxu0 0.0
    %1409 = vmatpush2.msra.mxu0 0.0
    %1410 = vmatprep.subr.mxu0 0.0
    %1411 = vmatpush2.msra.mxu0 0.0
    %1412 = vmatprep.subr.mxu0 0.0
    %1413 = vmatpush2.msra.mxu0 0.0
    %1414 = vmatprep.subr.mxu0 0.0
    %1415 = vmatpush2.msra.mxu0 0.0
    %1416 = vmatprep.subr.mxu0 0.0
    %1417 = vmatpush2.msra.mxu0 0.0
    %1418 = vmatprep.mubr.f32.mxu0 0.0
    %1419 = vmatmul.mubr.f32.gmra.mxu0 %v1343
    %v1420 = vpop.f32.mrf.mxu0
    %v1421 = vadd.f32 0.0, %v1420
    %v1422 = vpop.f32.mrf.mxu0
    %1423 = vmatprep.mubr.f32.mxu0 0.0
    %1424 = vmatmul.mubr.f32.gmra.mxu0 %v1346
    %v1425 = vpop.f32.mrf.mxu0
    %v1426 = vadd.f32 0.0, %v1425
    %v1427 = vpop.f32.mrf.mxu0
    %1428 = vmatprep.mubr.f32.mxu0 0.0
    %1429 = vmatmul.mubr.f32.gmra.mxu0 %v1349
    %v1430 = vpop.f32.mrf.mxu0
    %v1431 = vadd.f32 0.0, %v1430
    %v1432 = vpop.f32.mrf.mxu0
    %1433 = vmatprep.mubr.f32.mxu0 0.0
    %1434 = vmatmul.mubr.f32.gmra.mxu0 %v1352
    %v1435 = vpop.f32.mrf.mxu0
    %v1436 = vadd.f32 0.0, %v1435
    %v1437 = vpop.f32.mrf.mxu0
    %1438 = vdwg.mxu0
    %v1439 = vpack.c.bf16 %v1426, %v1421
    %v1440 = vpack.c.bf16 %v1436, %v1431
    %s1441 = scalar_lea.vmem [#allocation8], 32
    %v1442 = vld [vmem:[%s1441] sm:$0xf]
    %v1443 = vld [vmem:[%s1441 + $0x4] sm:$0xf]
    %v1444 = vld [vmem:[%s1441 + $0x8] sm:$0xf]
    %v1445 = vld [vmem:[%s1441 + $0xc] sm:$0xf]
    %v1450 = vunpack.c.l.b16 %v1442
    %v1451 = vunpack.c.l.b16 %v1443
    %v1452 = vunpack.c.l.b16 %v1444
    %v1453 = vunpack.c.l.b16 %v1445
    %v1454 = vpack.c.b16 %v1451, %v1450
    %v1455 = vpack.c.b16 %v1453, %v1452
    %v1459 = vsel %vm497, %v1439, 0
    %v1462 = vsel %vm497, %v1440, 0
    %1464 = vmatprep.subr.bf16.mxu0 0
    %1465 = vmatpush1.bf16.msra.mxu0 0
    %1466 = vmatprep.subr.bf16.mxu0 0
    %1467 = vmatpush1.bf16.msra.mxu0 0
    %1468 = vmatprep.subr.bf16.mxu0 0
    %1469 = vmatpush1.bf16.msra.mxu0 0
    %1470 = vmatprep.subr.bf16.mxu0 0
    %1471 = vmatpush1.bf16.msra.mxu0 0
    %1472 = vmatprep.subr.bf16.mxu0 0
    %1473 = vmatpush1.bf16.msra.mxu0 0
    %1474 = vmatprep.subr.bf16.mxu0 0
    %1475 = vmatpush1.bf16.msra.mxu0 0
    %1476 = vmatprep.subr.bf16.mxu0 0
    %1477 = vmatpush1.bf16.msra.mxu0 %v1455
    %1478 = vmatprep.subr.bf16.mxu0 0
    %1479 = vmatpush1.bf16.msra.mxu0 %v1454
    %1480 = vmatprep.subr.bf16.mxu0 0
    %1481 = vmatpush2.bf16.msra.mxu0 0
    %1482 = vmatprep.subr.bf16.mxu0 0
    %1483 = vmatpush2.bf16.msra.mxu0 0
    %1484 = vmatprep.subr.bf16.mxu0 0
    %1485 = vmatpush2.bf16.msra.mxu0 0
    %1486 = vmatprep.subr.bf16.mxu0 0
    %1487 = vmatpush2.bf16.msra.mxu0 0
    %1488 = vmatprep.subr.bf16.mxu0 0
    %1489 = vmatpush2.bf16.msra.mxu0 0
    %1490 = vmatprep.subr.bf16.mxu0 0
    %1491 = vmatpush2.bf16.msra.mxu0 0
    %1492 = vmatprep.subr.bf16.mxu0 0
    %1493 = vmatpush2.bf16.msra.mxu0 0
    %1494 = vmatprep.subr.bf16.mxu0 0
    %1495 = vmatpush2.bf16.msra.mxu0 0
    %1496 = vmatprep.mubr.bf16.mxu0 0
    %1497 = vmatmul.mubr.bf16.gmra.mxu0 %v1459
    %v1498 = vpop.f32.mrf.mxu0
    %v1499 = vadd.f32 0.0, %v1498
    %v1500 = vpop.f32.mrf.mxu0
    %v1501 = vpop.f32.mrf.mxu0
    %v1502 = vadd.f32 0.0, %v1501
    %v1503 = vpop.f32.mrf.mxu0
    %1504 = vmatprep.mubr.bf16.mxu0 0
    %1505 = vmatmul.mubr.bf16.gmra.mxu0 %v1462
    %v1506 = vpop.f32.mrf.mxu0
    %v1507 = vadd.f32 0.0, %v1506
    %v1508 = vpop.f32.mrf.mxu0
    %v1509 = vpop.f32.mrf.mxu0
    %v1510 = vadd.f32 0.0, %v1509
    %v1511 = vpop.f32.mrf.mxu0
    %1512 = vdwg.mxu0
    %v1513 = vadd.f32 %v1155, %v1499
    %v1514 = vadd.f32 %v1158, %v1502
    %v1515 = vadd.f32 %v1163, %v1507
    %v1516 = vadd.f32 %v1166, %v1510
    %1517 = vrot.lane.b32.xlu0 %v246, 32
    %v1518 = vpop.permute.xlu0 %1517
    %1519 = vrot.lane.b32.xlu0 %v249, 32
    %v1520 = vpop.permute.xlu0 %1519
    %1521 = vrot.lane.b32.xlu0 %v254, 32
    %v1522 = vpop.permute.xlu0 %1521
    %1523 = vrot.lane.b32.xlu0 %v257, 32
    %v1524 = vpop.permute.xlu0 %1523
    %1525 = vrot.lane.b32.xlu0 %v359, 32
    %v1526 = vpop.permute.xlu0 %1525
    %1527 = vrot.lane.b32.xlu0 %v362, 32
    %v1528 = vpop.permute.xlu0 %1527
    %1529 = vrot.lane.b32.xlu0 %v367, 32
    %v1530 = vpop.permute.xlu0 %1529
    %1531 = vrot.lane.b32.xlu0 %v370, 32
    %v1532 = vpop.permute.xlu0 %1531
    %v1533 = vsel %vm497, %v1518, 0
    %v1535 = vsel %vm497, %v1520, 0
    %v1537 = vsel %vm497, %v1522, 0
    %v1539 = vsel %vm497, %v1524, 0
    %v1541 = vsel %vm497, %v1526, 0
    %v1543 = vsel %vm497, %v1528, 0
    %v1545 = vsel %vm497, %v1530, 0
    %v1547 = vsel %vm497, %v1532, 0
    %1549 = vmatprep.subr.mxu0 0.0
    %1550 = vmatpush1.xpose.msra.mxu0 0.0
    %1551 = vmatprep.subr.mxu0 0.0
    %1552 = vmatpush1.xpose.msra.mxu0 0.0
    %1553 = vmatprep.subr.mxu0 0.0
    %1554 = vmatpush1.xpose.msra.mxu0 0.0
    %1555 = vmatprep.subr.mxu0 0.0
    %1556 = vmatpush1.xpose.msra.mxu0 0.0
    %1557 = vmatprep.subr.mxu0 0.0
    %1558 = vmatpush1.xpose.msra.mxu0 0.0
    %1559 = vmatprep.subr.mxu0 0.0
    %1560 = vmatpush1.xpose.msra.mxu0 0.0
    %1561 = vmatprep.subr.mxu0 0.0
    %1562 = vmatpush1.xpose.msra.mxu0 0.0
    %1563 = vmatprep.subr.mxu0 0.0
    %1564 = vmatpush1.xpose.msra.mxu0 0.0
    %1565 = vmatprep.subr.mxu0 0.0
    %1566 = vmatpush1.xpose.msra.mxu0 0.0
    %1567 = vmatprep.subr.mxu0 0.0
    %1568 = vmatpush1.xpose.msra.mxu0 0.0
    %1569 = vmatprep.subr.mxu0 0.0
    %1570 = vmatpush1.xpose.msra.mxu0 0.0
    %1571 = vmatprep.subr.mxu0 0.0
    %1572 = vmatpush1.xpose.msra.mxu0 0.0
    %1573 = vmatprep.subr.mxu0 0.0
    %1574 = vmatpush1.xpose.msra.mxu0 %v1547
    %1575 = vmatprep.subr.mxu0 0.0
    %1576 = vmatpush1.xpose.msra.mxu0 %v1545
    %1577 = vmatprep.subr.mxu0 0.0
    %1578 = vmatpush1.xpose.msra.mxu0 %v1543
    %1579 = vmatprep.subr.mxu0 0.0
    %1580 = vmatpush1.xpose.msra.mxu0 %v1541
    %1581 = vmatprep.subr.mxu0 0.0
    %1582 = vmatpush2.xpose.msra.mxu0 0.0
    %1583 = vmatprep.subr.mxu0 0.0
    %1584 = vmatpush2.xpose.msra.mxu0 0.0
    %1585 = vmatprep.subr.mxu0 0.0
    %1586 = vmatpush2.xpose.msra.mxu0 0.0
    %1587 = vmatprep.subr.mxu0 0.0
    %1588 = vmatpush2.xpose.msra.mxu0 0.0
    %1589 = vmatprep.subr.mxu0 0.0
    %1590 = vmatpush2.xpose.msra.mxu0 0.0
    %1591 = vmatprep.subr.mxu0 0.0
    %1592 = vmatpush2.xpose.msra.mxu0 0.0
    %1593 = vmatprep.subr.mxu0 0.0
    %1594 = vmatpush2.xpose.msra.mxu0 0.0
    %1595 = vmatprep.subr.mxu0 0.0
    %1596 = vmatpush2.xpose.msra.mxu0 0.0
    %1597 = vmatprep.subr.mxu0 0.0
    %1598 = vmatpush2.xpose.msra.mxu0 0.0
    %1599 = vmatprep.subr.mxu0 0.0
    %1600 = vmatpush2.xpose.msra.mxu0 0.0
    %1601 = vmatprep.subr.mxu0 0.0
    %1602 = vmatpush2.xpose.msra.mxu0 0.0
    %1603 = vmatprep.subr.mxu0 0.0
    %1604 = vmatpush2.xpose.msra.mxu0 0.0
    %1605 = vmatprep.subr.mxu0 0.0
    %1606 = vmatpush2.xpose.msra.mxu0 0.0
    %1607 = vmatprep.subr.mxu0 0.0
    %1608 = vmatpush2.xpose.msra.mxu0 0.0
    %1609 = vmatprep.subr.mxu0 0.0
    %1610 = vmatpush2.xpose.msra.mxu0 0.0
    %1611 = vmatprep.subr.mxu0 0.0
    %1612 = vmatpush2.xpose.msra.mxu0 0.0
    %1613 = vmatprep.mubr.f32.mxu0 0.0
    %1614 = vmatmul.mubr.f32.gmra.mxu0 %v1533
    %v1615 = vpop.f32.mrf.mxu0
    %v1616 = vadd.f32 %v493, %v1615
    %v1617 = vpop.f32.mrf.mxu0
    %1618 = vmatprep.mubr.f32.mxu0 0.0
    %1619 = vmatmul.mubr.f32.gmra.mxu0 %v1535
    %v1620 = vpop.f32.mrf.mxu0
    %v1621 = vadd.f32 %v494, %v1620
    %v1622 = vpop.f32.mrf.mxu0
    %1623 = vmatprep.mubr.f32.mxu0 0.0
    %1624 = vmatmul.mubr.f32.gmra.mxu0 %v1537
    %v1625 = vpop.f32.mrf.mxu0
    %v1626 = vadd.f32 %v495, %v1625
    %v1627 = vpop.f32.mrf.mxu0
    %1628 = vmatprep.mubr.f32.mxu0 0.0
    %1629 = vmatmul.mubr.f32.gmra.mxu0 %v1539
    %v1630 = vpop.f32.mrf.mxu0
    %v1631 = vadd.f32 %v496, %v1630
    %v1632 = vpop.f32.mrf.mxu0
    %1633 = vdwg.mxu0
    %v1634 = vsel %vm497, %v1616, -inf
    %1635 = vmax.xlane.f32.xlu0 %v1634
    %v1636 = vpop.xlane.xlu0 %1635
    %v1637 = vsel %vm497, %v1621, -inf
    %1638 = vmax.xlane.f32.xlu0 %v1637
    %v1639 = vpop.xlane.xlu0 %1638
    %v1640 = vsel %vm497, %v1626, -inf
    %1641 = vmax.xlane.f32.xlu0 %v1640
    %v1642 = vpop.xlane.xlu0 %1641
    %v1643 = vsel %vm497, %v1631, -inf
    %1644 = vmax.xlane.f32.xlu0 %v1643
    %v1645 = vpop.xlane.xlu0 %1644
    %v1646 = vsub.f32 %v1616, %v1636
    %v1647 = vsub.f32 %v1621, %v1639
    %v1648 = vsub.f32 %v1626, %v1642
    %v1649 = vsub.f32 %v1631, %v1645
    %v1650 = vmul.f32 %v1646, 1.442695
    %v1651 = vpow.pop %v1650
    %v1652 = vmul.f32 %v1647, 1.442695
    %v1653 = vpow.pop %v1652
    %v1654 = vmul.f32 %v1648, 1.442695
    %v1655 = vpow.pop %v1654
    %v1656 = vmul.f32 %v1649, 1.442695
    %v1657 = vpow.pop %v1656
    %v1658 = vsel %vm497, %v1651, 0.0
    %1659 = vadd.xlane.f32.xlu0 %v1658
    %v1660 = vpop.xlane.xlu0 %1659
    %v1661 = vsel %vm497, %v1653, 0.0
    %1662 = vadd.xlane.f32.xlu0 %v1661
    %v1663 = vpop.xlane.xlu0 %1662
    %v1664 = vsel %vm497, %v1655, 0.0
    %1665 = vadd.xlane.f32.xlu0 %v1664
    %v1666 = vpop.xlane.xlu0 %1665
    %v1667 = vsel %vm497, %v1657, 0.0
    %1668 = vadd.xlane.f32.xlu0 %v1667
    %v1669 = vpop.xlane.xlu0 %1668
    %v1670 = vrcp.pop %v1660
    %v1671 = vmul.f32 %v1651, %v1670
    %v1672 = vrcp.pop %v1663
    %v1673 = vmul.f32 %v1653, %v1672
    %v1674 = vrcp.pop %v1666
    %v1675 = vmul.f32 %v1655, %v1674
    %v1676 = vrcp.pop %v1669
    %v1677 = vmul.f32 %v1657, %v1676
    %1678 = vrot.lane.b32.xlu0 %v479, 32
    %v1679 = vpop.permute.xlu0 %1678
    %1680 = vrot.lane.b32.xlu0 %v482, 32
    %v1681 = vpop.permute.xlu0 %1680
    %1682 = vrot.lane.b32.xlu0 %v487, 32
    %v1683 = vpop.permute.xlu0 %1682
    %1684 = vrot.lane.b32.xlu0 %v490, 32
    %v1685 = vpop.permute.xlu0 %1684
    %v1691 = vsel %vm497, %v1671, 0
    %v1694 = vsel %vm497, %v1673, 0
    %v1697 = vsel %vm497, %v1675, 0
    %v1700 = vsel %vm497, %v1677, 0
    %1702 = vmatprep.subr.mxu0 0.0
    %1703 = vmatpush1.msra.mxu0 0.0
    %1704 = vmatprep.subr.mxu0 0.0
    %1705 = vmatpush1.msra.mxu0 0.0
    %1706 = vmatprep.subr.mxu0 0.0
    %1707 = vmatpush1.msra.mxu0 0.0
    %1708 = vmatprep.subr.mxu0 0.0
    %1709 = vmatpush1.msra.mxu0 0.0
    %1710 = vmatprep.subr.mxu0 0.0
    %1711 = vmatpush1.msra.mxu0 0.0
    %1712 = vmatprep.subr.mxu0 0.0
    %1713 = vmatpush1.msra.mxu0 0.0
    %1714 = vmatprep.subr.mxu0 0.0
    %1715 = vmatpush1.msra.mxu0 0.0
    %1716 = vmatprep.subr.mxu0 0.0
    %1717 = vmatpush1.msra.mxu0 0.0
    %1718 = vmatprep.subr.mxu0 0.0
    %1719 = vmatpush1.msra.mxu0 0.0
    %1720 = vmatprep.subr.mxu0 0.0
    %1721 = vmatpush1.msra.mxu0 0.0
    %1722 = vmatprep.subr.mxu0 0.0
    %1723 = vmatpush1.msra.mxu0 0.0
    %1724 = vmatprep.subr.mxu0 0.0
    %1725 = vmatpush1.msra.mxu0 0.0
    %1726 = vmatprep.subr.mxu0 0.0
    %1727 = vmatpush1.msra.mxu0 %v1685
    %1728 = vmatprep.subr.mxu0 0.0
    %1729 = vmatpush1.msra.mxu0 %v1683
    %1730 = vmatprep.subr.mxu0 0.0
    %1731 = vmatpush1.msra.mxu0 %v1681
    %1732 = vmatprep.subr.mxu0 0.0
    %1733 = vmatpush1.msra.mxu0 %v1679
    %1734 = vmatprep.subr.mxu0 0.0
    %1735 = vmatpush2.msra.mxu0 0.0
    %1736 = vmatprep.subr.mxu0 0.0
    %1737 = vmatpush2.msra.mxu0 0.0
    %1738 = vmatprep.subr.mxu0 0.0
    %1739 = vmatpush2.msra.mxu0 0.0
    %1740 = vmatprep.subr.mxu0 0.0
    %1741 = vmatpush2.msra.mxu0 0.0
    %1742 = vmatprep.subr.mxu0 0.0
    %1743 = vmatpush2.msra.mxu0 0.0
    %1744 = vmatprep.subr.mxu0 0.0
    %1745 = vmatpush2.msra.mxu0 0.0
    %1746 = vmatprep.subr.mxu0 0.0
    %1747 = vmatpush2.msra.mxu0 0.0
    %1748 = vmatprep.subr.mxu0 0.0
    %1749 = vmatpush2.msra.mxu0 0.0
    %1750 = vmatprep.subr.mxu0 0.0
    %1751 = vmatpush2.msra.mxu0 0.0
    %1752 = vmatprep.subr.mxu0 0.0
    %1753 = vmatpush2.msra.mxu0 0.0
    %1754 = vmatprep.subr.mxu0 0.0
    %1755 = vmatpush2.msra.mxu0 0.0
    %1756 = vmatprep.subr.mxu0 0.0
    %1757 = vmatpush2.msra.mxu0 0.0
    %1758 = vmatprep.subr.mxu0 0.0
    %1759 = vmatpush2.msra.mxu0 0.0
    %1760 = vmatprep.subr.mxu0 0.0
    %1761 = vmatpush2.msra.mxu0 0.0
    %1762 = vmatprep.subr.mxu0 0.0
    %1763 = vmatpush2.msra.mxu0 0.0
    %1764 = vmatprep.subr.mxu0 0.0
    %1765 = vmatpush2.msra.mxu0 0.0
    %1766 = vmatprep.mubr.f32.mxu0 0.0
    %1767 = vmatmul.mubr.f32.gmra.mxu0 %v1691
    %v1768 = vpop.f32.mrf.mxu0
    %v1769 = vadd.f32 0.0, %v1768
    %v1770 = vpop.f32.mrf.mxu0
    %1771 = vmatprep.mubr.f32.mxu0 0.0
    %1772 = vmatmul.mubr.f32.gmra.mxu0 %v1694
    %v1773 = vpop.f32.mrf.mxu0
    %v1774 = vadd.f32 0.0, %v1773
    %v1775 = vpop.f32.mrf.mxu0
    %1776 = vmatprep.mubr.f32.mxu0 0.0
    %1777 = vmatmul.mubr.f32.gmra.mxu0 %v1697
    %v1778 = vpop.f32.mrf.mxu0
    %v1779 = vadd.f32 0.0, %v1778
    %v1780 = vpop.f32.mrf.mxu0
    %1781 = vmatprep.mubr.f32.mxu0 0.0
    %1782 = vmatmul.mubr.f32.gmra.mxu0 %v1700
    %v1783 = vpop.f32.mrf.mxu0
    %v1784 = vadd.f32 0.0, %v1783
    %v1785 = vpop.f32.mrf.mxu0
    %1786 = vdwg.mxu0
    %v1787 = vpack.c.bf16 %v1774, %v1769
    %v1788 = vpack.c.bf16 %v1784, %v1779
    %s1789 = scalar_lea.vmem [#allocation8], 48
    %v1790 = vld [vmem:[%s1789] sm:$0xf]
    %v1791 = vld [vmem:[%s1789 + $0x4] sm:$0xf]
    %v1792 = vld [vmem:[%s1789 + $0x8] sm:$0xf]
    %v1793 = vld [vmem:[%s1789 + $0xc] sm:$0xf]
    %v1798 = vunpack.c.l.b16 %v1790
    %v1799 = vunpack.c.l.b16 %v1791
    %v1800 = vunpack.c.l.b16 %v1792
    %v1801 = vunpack.c.l.b16 %v1793
    %v1802 = vpack.c.b16 %v1799, %v1798
    %v1803 = vpack.c.b16 %v1801, %v1800
    %v1807 = vsel %vm497, %v1787, 0
    %v1810 = vsel %vm497, %v1788, 0
    %1812 = vmatprep.subr.bf16.mxu0 0
    %1813 = vmatpush1.bf16.msra.mxu0 0
    %1814 = vmatprep.subr.bf16.mxu0 0
    %1815 = vmatpush1.bf16.msra.mxu0 0
    %1816 = vmatprep.subr.bf16.mxu0 0
    %1817 = vmatpush1.bf16.msra.mxu0 0
    %1818 = vmatprep.subr.bf16.mxu0 0
    %1819 = vmatpush1.bf16.msra.mxu0 0
    %1820 = vmatprep.subr.bf16.mxu0 0
    %1821 = vmatpush1.bf16.msra.mxu0 0
    %1822 = vmatprep.subr.bf16.mxu0 0
    %1823 = vmatpush1.bf16.msra.mxu0 0
    %1824 = vmatprep.subr.bf16.mxu0 0
    %1825 = vmatpush1.bf16.msra.mxu0 %v1803
    %1826 = vmatprep.subr.bf16.mxu0 0
    %1827 = vmatpush1.bf16.msra.mxu0 %v1802
    %1828 = vmatprep.subr.bf16.mxu0 0
    %1829 = vmatpush2.bf16.msra.mxu0 0
    %1830 = vmatprep.subr.bf16.mxu0 0
    %1831 = vmatpush2.bf16.msra.mxu0 0
    %1832 = vmatprep.subr.bf16.mxu0 0
    %1833 = vmatpush2.bf16.msra.mxu0 0
    %1834 = vmatprep.subr.bf16.mxu0 0
    %1835 = vmatpush2.bf16.msra.mxu0 0
    %1836 = vmatprep.subr.bf16.mxu0 0
    %1837 = vmatpush2.bf16.msra.mxu0 0
    %1838 = vmatprep.subr.bf16.mxu0 0
    %1839 = vmatpush2.bf16.msra.mxu0 0
    %1840 = vmatprep.subr.bf16.mxu0 0
    %1841 = vmatpush2.bf16.msra.mxu0 0
    %1842 = vmatprep.subr.bf16.mxu0 0
    %1843 = vmatpush2.bf16.msra.mxu0 0
    %1844 = vmatprep.mubr.bf16.mxu0 0
    %1845 = vmatmul.mubr.bf16.gmra.mxu0 %v1807
    %v1846 = vpop.f32.mrf.mxu0
    %v1847 = vadd.f32 0.0, %v1846
    %v1848 = vpop.f32.mrf.mxu0
    %v1849 = vpop.f32.mrf.mxu0
    %v1850 = vadd.f32 0.0, %v1849
    %v1851 = vpop.f32.mrf.mxu0
    %1852 = vmatprep.mubr.bf16.mxu0 0
    %1853 = vmatmul.mubr.bf16.gmra.mxu0 %v1810
    %v1854 = vpop.f32.mrf.mxu0
    %v1855 = vadd.f32 0.0, %v1854
    %v1856 = vpop.f32.mrf.mxu0
    %v1857 = vpop.f32.mrf.mxu0
    %v1858 = vadd.f32 0.0, %v1857
    %v1859 = vpop.f32.mrf.mxu0
    %1860 = vdwg.mxu0
    %v1861 = vadd.f32 %v1513, %v1847
    %v1862 = vadd.f32 %v1514, %v1850
    %v1863 = vadd.f32 %v1515, %v1855
    %v1864 = vadd.f32 %v1516, %v1858
    %v1865 = vld [vmem:[%s7] sm:$0x1]
    %v1867 = vlaneseq
    %v1868 = vshrl.u32 %v1867, 7
    %v1869 = vsub.s32 0, %v1868
    %v1870 = vrot.slane %v1865, %v1869
    %v1872 = vadd.f32 %v1861, %v1870
    %v1873 = vadd.f32 %v1862, %v1870
    %v1874 = vadd.f32 %v1863, %v1870
    %v1875 = vadd.f32 %v1864, %v1870
    %v1876 = vrot.slane %v134, 6
    %v1877 = vrot.slane %v135, 6
    %v1878 = vrot.slane %v136, 6
    %v1879 = vrot.slane %v137, 6
    %v1880 = vlaneseq
    %v1881 = vshrl.u32 %v1880, 7
    %vm1882 = vcmp.lt.s32.totalorder %v1881, 2
    %v1883 = vsel %vm1882, %v1878, %v1879
    %v1884 = vsel %vm1882, %v1877, %v1878
    %v1885 = vsel %vm1882, %v1876, %v1877
    %v1886 = vsel %vm1882, %v1879, %v1876
    %v1887 = vld [vmem:[%s13] sm:$0xff]
    %v1888 = vld [vmem:[%s13 + $0x8] sm:$0xff]
    %v1889 = vld [vmem:[%s13 + $0x10] sm:$0xff]
    %v1890 = vld [vmem:[%s13 + $0x18] sm:$0xff]
    %1892 = vset.pattern.permute.xlu0 0
    %1893 = vperm.xlu0 %1892, %v1887
    %v1894 = vpop.permute.xlu0 %1893
    %1897 = vset.pattern.permute.xlu0 0
    %1898 = vperm.xlu0 %1897, %v1888
    %v1899 = vpop.permute.xlu0 %1898
    %1902 = vset.pattern.permute.xlu0 0
    %1903 = vperm.xlu0 %1902, %v1889
    %v1904 = vpop.permute.xlu0 %1903
    %1907 = vset.pattern.permute.xlu0 0
    %1908 = vperm.xlu0 %1907, %v1890
    %v1909 = vpop.permute.xlu0 %1908
    %v1911 = vmul.f32 %v1886, %v1894
    %v1912 = vmul.f32 %v1885, %v1899
    %v1913 = vmul.f32 %v1884, %v1904
    %v1914 = vmul.f32 %v1883, %v1909
    %v1915 = vrot.slane %v134, 2
    %v1916 = vrot.slane %v135, 2
    %v1917 = vrot.slane %v136, 2
    %v1918 = vrot.slane %v137, 2
    %vm1919 = vcmp.lt.s32.totalorder %v1881, 6
    %v1920 = vsel %vm1919, %v1917, %v1918
    %v1921 = vsel %vm1919, %v1916, %v1917
    %v1922 = vsel %vm1919, %v1915, %v1916
    %v1923 = vsel %vm1919, %v1918, %v1915
    %v1924 = vld [vmem:[%s14] sm:$0xff]
    %v1925 = vld [vmem:[%s14 + $0x8] sm:$0xff]
    %v1926 = vld [vmem:[%s14 + $0x10] sm:$0xff]
    %v1927 = vld [vmem:[%s14 + $0x18] sm:$0xff]
    %1929 = vset.pattern.permute.xlu0 0
    %1930 = vperm.xlu0 %1929, %v1924
    %v1931 = vpop.permute.xlu0 %1930
    %1934 = vset.pattern.permute.xlu0 0
    %1935 = vperm.xlu0 %1934, %v1925
    %v1936 = vpop.permute.xlu0 %1935
    %1939 = vset.pattern.permute.xlu0 0
    %1940 = vperm.xlu0 %1939, %v1926
    %v1941 = vpop.permute.xlu0 %1940
    %1944 = vset.pattern.permute.xlu0 0
    %1945 = vperm.xlu0 %1944, %v1927
    %v1946 = vpop.permute.xlu0 %1945
    %v1948 = vmul.f32 %v1922, %v1931
    %v1949 = vmul.f32 %v1921, %v1936
    %v1950 = vmul.f32 %v1920, %v1941
    %v1951 = vmul.f32 %v1923, %v1946
    %v1952 = vpack.c.bf16 %v1912, %v1911
    %v1953 = vpack.c.bf16 %v1914, %v1913
    %v1954 = vld [vmem:[#allocation10] sm:$0xf]
    %v1955 = vld [vmem:[#allocation10 + $0x4] sm:$0xf]
    %v1956 = vld [vmem:[#allocation10 + $0x8] sm:$0xf]
    %v1957 = vld [vmem:[#allocation10 + $0xc] sm:$0xf]
    %v1958 = vld [vmem:[#allocation10 + $0x10] sm:$0xf]
    %v1959 = vld [vmem:[#allocation10 + $0x14] sm:$0xf]
    %v1960 = vld [vmem:[#allocation10 + $0x18] sm:$0xf]
    %v1961 = vld [vmem:[#allocation10 + $0x1c] sm:$0xf]
    %v1962 = vld [vmem:[#allocation10 + $0x20] sm:$0xf]
    %v1963 = vld [vmem:[#allocation10 + $0x24] sm:$0xf]
    %v1964 = vld [vmem:[#allocation10 + $0x28] sm:$0xf]
    %v1965 = vld [vmem:[#allocation10 + $0x2c] sm:$0xf]
    %v1966 = vld [vmem:[#allocation10 + $0x30] sm:$0xf]
    %v1967 = vld [vmem:[#allocation10 + $0x34] sm:$0xf]
    %v1968 = vld [vmem:[#allocation10 + $0x38] sm:$0xf]
    %v1969 = vld [vmem:[#allocation10 + $0x3c] sm:$0xf]
    %s1970 = scalar_lea.vmem [#allocation10], 64
    %v1971 = vld [vmem:[%s1970] sm:$0xf]
    %v1972 = vld [vmem:[%s1970 + $0x4] sm:$0xf]
    %v1973 = vld [vmem:[%s1970 + $0x8] sm:$0xf]
    %v1974 = vld [vmem:[%s1970 + $0xc] sm:$0xf]
    %v1975 = vld [vmem:[%s1970 + $0x10] sm:$0xf]
    %v1976 = vld [vmem:[%s1970 + $0x14] sm:$0xf]
    %v1977 = vld [vmem:[%s1970 + $0x18] sm:$0xf]
    %v1978 = vld [vmem:[%s1970 + $0x1c] sm:$0xf]
    %v1979 = vld [vmem:[%s1970 + $0x20] sm:$0xf]
    %v1980 = vld [vmem:[%s1970 + $0x24] sm:$0xf]
    %v1981 = vld [vmem:[%s1970 + $0x28] sm:$0xf]
    %v1982 = vld [vmem:[%s1970 + $0x2c] sm:$0xf]
    %v1983 = vld [vmem:[%s1970 + $0x30] sm:$0xf]
    %v1984 = vld [vmem:[%s1970 + $0x34] sm:$0xf]
    %v1985 = vld [vmem:[%s1970 + $0x38] sm:$0xf]
    %v1986 = vld [vmem:[%s1970 + $0x3c] sm:$0xf]
    %v2003 = vunpack.c.l.b16 %v1971
    %v2004 = vunpack.c.l.b16 %v1972
    %v2005 = vunpack.c.l.b16 %v1973
    %v2006 = vunpack.c.l.b16 %v1974
    %v2007 = vunpack.c.l.b16 %v1975
    %v2008 = vunpack.c.l.b16 %v1976
    %v2009 = vunpack.c.l.b16 %v1977
    %v2010 = vunpack.c.l.b16 %v1978
    %v2011 = vunpack.c.l.b16 %v1979
    %v2012 = vunpack.c.l.b16 %v1980
    %v2013 = vunpack.c.l.b16 %v1981
    %v2014 = vunpack.c.l.b16 %v1982
    %v2015 = vunpack.c.l.b16 %v1983
    %v2016 = vunpack.c.l.b16 %v1984
    %v2017 = vunpack.c.l.b16 %v1985
    %v2018 = vunpack.c.l.b16 %v1986
    %v2019 = vpack.c.b16 %v2004, %v2003
    %v2020 = vpack.c.b16 %v2006, %v2005
    %v2021 = vpack.c.b16 %v2008, %v2007
    %v2022 = vpack.c.b16 %v2010, %v2009
    %v2023 = vpack.c.b16 %v2012, %v2011
    %v2024 = vpack.c.b16 %v2014, %v2013
    %v2025 = vpack.c.b16 %v2016, %v2015
    %v2026 = vpack.c.b16 %v2018, %v2017
    %2035 = vmatprep.subr.bf16.mxu0 0
    %2036 = vmatpush1.bf16.msra.mxu0 %v2026
    %2037 = vmatprep.subr.bf16.mxu0 0
    %2038 = vmatpush1.bf16.msra.mxu0 %v2025
    %2039 = vmatprep.subr.bf16.mxu0 0
    %2040 = vmatpush1.bf16.msra.mxu0 %v2024
    %2041 = vmatprep.subr.bf16.mxu0 0
    %2042 = vmatpush1.bf16.msra.mxu0 %v2023
    %2043 = vmatprep.subr.bf16.mxu0 0
    %2044 = vmatpush1.bf16.msra.mxu0 %v2022
    %2045 = vmatprep.subr.bf16.mxu0 0
    %2046 = vmatpush1.bf16.msra.mxu0 %v2021
    %2047 = vmatprep.subr.bf16.mxu0 0
    %2048 = vmatpush1.bf16.msra.mxu0 %v2020
    %2049 = vmatprep.subr.bf16.mxu0 0
    %2050 = vmatpush1.bf16.msra.mxu0 %v2019
    %2051 = vmatprep.subr.bf16.mxu0 0
    %2052 = vmatpush2.bf16.msra.mxu0 0
    %2053 = vmatprep.subr.bf16.mxu0 0
    %2054 = vmatpush2.bf16.msra.mxu0 0
    %2055 = vmatprep.subr.bf16.mxu0 0
    %2056 = vmatpush2.bf16.msra.mxu0 0
    %2057 = vmatprep.subr.bf16.mxu0 0
    %2058 = vmatpush2.bf16.msra.mxu0 0
    %2059 = vmatprep.subr.bf16.mxu0 0
    %2060 = vmatpush2.bf16.msra.mxu0 0
    %2061 = vmatprep.subr.bf16.mxu0 0
    %2062 = vmatpush2.bf16.msra.mxu0 0
    %2063 = vmatprep.subr.bf16.mxu0 0
    %2064 = vmatpush2.bf16.msra.mxu0 0
    %2065 = vmatprep.subr.bf16.mxu0 0
    %2066 = vmatpush2.bf16.msra.mxu0 0
    %2067 = vmatprep.mubr.bf16.mxu0 0
    %2068 = vmatmul.mubr.bf16.gmra.mxu0 %v138
    %v2069 = vpop.f32.mrf.mxu0
    %v2070 = vadd.f32 0.0, %v2069
    %v2071 = vpop.f32.mrf.mxu0
    %v2072 = vpop.f32.mrf.mxu0
    %v2073 = vadd.f32 0.0, %v2072
    %v2074 = vpop.f32.mrf.mxu0
    %2075 = vmatprep.mubr.bf16.mxu0 0
    %2076 = vmatmul.mubr.bf16.gmra.mxu0 %v139
    %v2077 = vpop.f32.mrf.mxu0
    %v2078 = vadd.f32 0.0, %v2077
    %v2079 = vpop.f32.mrf.mxu0
    %v2080 = vpop.f32.mrf.mxu0
    %v2081 = vadd.f32 0.0, %v2080
    %v2082 = vpop.f32.mrf.mxu0
    %2083 = vdwg.mxu0
    %v2100 = vunpack.c.l.b16 %v1954
    %v2101 = vunpack.c.l.b16 %v1955
    %v2102 = vunpack.c.l.b16 %v1956
    %v2103 = vunpack.c.l.b16 %v1957
    %v2104 = vunpack.c.l.b16 %v1958
    %v2105 = vunpack.c.l.b16 %v1959
    %v2106 = vunpack.c.l.b16 %v1960
    %v2107 = vunpack.c.l.b16 %v1961
    %v2108 = vunpack.c.l.b16 %v1962
    %v2109 = vunpack.c.l.b16 %v1963
    %v2110 = vunpack.c.l.b16 %v1964
    %v2111 = vunpack.c.l.b16 %v1965
    %v2112 = vunpack.c.l.b16 %v1966
    %v2113 = vunpack.c.l.b16 %v1967
    %v2114 = vunpack.c.l.b16 %v1968
    %v2115 = vunpack.c.l.b16 %v1969
    %v2116 = vpack.c.b16 %v2101, %v2100
    %v2117 = vpack.c.b16 %v2103, %v2102
    %v2118 = vpack.c.b16 %v2105, %v2104
    %v2119 = vpack.c.b16 %v2107, %v2106
    %v2120 = vpack.c.b16 %v2109, %v2108
    %v2121 = vpack.c.b16 %v2111, %v2110
    %v2122 = vpack.c.b16 %v2113, %v2112
    %v2123 = vpack.c.b16 %v2115, %v2114
    %2132 = vmatprep.subr.bf16.mxu0 0
    %2133 = vmatpush1.bf16.msra.mxu0 %v2123
    %2134 = vmatprep.subr.bf16.mxu0 0
    %2135 = vmatpush1.bf16.msra.mxu0 %v2122
    %2136 = vmatprep.subr.bf16.mxu0 0
    %2137 = vmatpush1.bf16.msra.mxu0 %v2121
    %2138 = vmatprep.subr.bf16.mxu0 0
    %2139 = vmatpush1.bf16.msra.mxu0 %v2120
    %2140 = vmatprep.subr.bf16.mxu0 0
    %2141 = vmatpush1.bf16.msra.mxu0 %v2119
    %2142 = vmatprep.subr.bf16.mxu0 0
    %2143 = vmatpush1.bf16.msra.mxu0 %v2118
    %2144 = vmatprep.subr.bf16.mxu0 0
    %2145 = vmatpush1.bf16.msra.mxu0 %v2117
    %2146 = vmatprep.subr.bf16.mxu0 0
    %2147 = vmatpush1.bf16.msra.mxu0 %v2116
    %2148 = vmatprep.subr.bf16.mxu0 0
    %2149 = vmatpush2.bf16.msra.mxu0 0
    %2150 = vmatprep.subr.bf16.mxu0 0
    %2151 = vmatpush2.bf16.msra.mxu0 0
    %2152 = vmatprep.subr.bf16.mxu0 0
    %2153 = vmatpush2.bf16.msra.mxu0 0
    %2154 = vmatprep.subr.bf16.mxu0 0
    %2155 = vmatpush2.bf16.msra.mxu0 0
    %2156 = vmatprep.subr.bf16.mxu0 0
    %2157 = vmatpush2.bf16.msra.mxu0 0
    %2158 = vmatprep.subr.bf16.mxu0 0
    %2159 = vmatpush2.bf16.msra.mxu0 0
    %2160 = vmatprep.subr.bf16.mxu0 0
    %2161 = vmatpush2.bf16.msra.mxu0 0
    %2162 = vmatprep.subr.bf16.mxu0 0
    %2163 = vmatpush2.bf16.msra.mxu0 0
    %2164 = vmatprep.mubr.bf16.mxu0 0
    %2165 = vmatmul.mubr.bf16.gmra.mxu0 %v1952
    %v2166 = vpop.f32.mrf.mxu0
    %v2167 = vadd.f32 %v2070, %v2166
    %v2168 = vpop.f32.mrf.mxu0
    %v2169 = vpop.f32.mrf.mxu0
    %v2170 = vadd.f32 %v2073, %v2169
    %v2171 = vpop.f32.mrf.mxu0
    %2172 = vmatprep.mubr.bf16.mxu0 0
    %2173 = vmatmul.mubr.bf16.gmra.mxu0 %v1953
    %v2174 = vpop.f32.mrf.mxu0
    %v2175 = vadd.f32 %v2078, %v2174
    %v2176 = vpop.f32.mrf.mxu0
    %v2177 = vpop.f32.mrf.mxu0
    %v2178 = vadd.f32 %v2081, %v2177
    %v2179 = vpop.f32.mrf.mxu0
    %2180 = vdwg.mxu0
    %v2181 = vpack.c.bf16 %v1949, %v1948
    %v2182 = vpack.c.bf16 %v1951, %v1950
    %s2183 = scalar_lea.vmem [#allocation10], 128
    %v2184 = vld [vmem:[%s2183] sm:$0xf]
    %v2185 = vld [vmem:[%s2183 + $0x4] sm:$0xf]
    %v2186 = vld [vmem:[%s2183 + $0x8] sm:$0xf]
    %v2187 = vld [vmem:[%s2183 + $0xc] sm:$0xf]
    %v2188 = vld [vmem:[%s2183 + $0x10] sm:$0xf]
    %v2189 = vld [vmem:[%s2183 + $0x14] sm:$0xf]
    %v2190 = vld [vmem:[%s2183 + $0x18] sm:$0xf]
    %v2191 = vld [vmem:[%s2183 + $0x1c] sm:$0xf]
    %v2192 = vld [vmem:[%s2183 + $0x20] sm:$0xf]
    %v2193 = vld [vmem:[%s2183 + $0x24] sm:$0xf]
    %v2194 = vld [vmem:[%s2183 + $0x28] sm:$0xf]
    %v2195 = vld [vmem:[%s2183 + $0x2c] sm:$0xf]
    %v2196 = vld [vmem:[%s2183 + $0x30] sm:$0xf]
    %v2197 = vld [vmem:[%s2183 + $0x34] sm:$0xf]
    %v2198 = vld [vmem:[%s2183 + $0x38] sm:$0xf]
    %v2199 = vld [vmem:[%s2183 + $0x3c] sm:$0xf]
    %v2216 = vunpack.c.l.b16 %v2184
    %v2217 = vunpack.c.l.b16 %v2185
    %v2218 = vunpack.c.l.b16 %v2186
    %v2219 = vunpack.c.l.b16 %v2187
    %v2220 = vunpack.c.l.b16 %v2188
    %v2221 = vunpack.c.l.b16 %v2189
    %v2222 = vunpack.c.l.b16 %v2190
    %v2223 = vunpack.c.l.b16 %v2191
    %v2224 = vunpack.c.l.b16 %v2192
    %v2225 = vunpack.c.l.b16 %v2193
    %v2226 = vunpack.c.l.b16 %v2194
    %v2227 = vunpack.c.l.b16 %v2195
    %v2228 = vunpack.c.l.b16 %v2196
    %v2229 = vunpack.c.l.b16 %v2197
    %v2230 = vunpack.c.l.b16 %v2198
    %v2231 = vunpack.c.l.b16 %v2199
    %v2232 = vpack.c.b16 %v2217, %v2216
    %v2233 = vpack.c.b16 %v2219, %v2218
    %v2234 = vpack.c.b16 %v2221, %v2220
    %v2235 = vpack.c.b16 %v2223, %v2222
    %v2236 = vpack.c.b16 %v2225, %v2224
    %v2237 = vpack.c.b16 %v2227, %v2226
    %v2238 = vpack.c.b16 %v2229, %v2228
    %v2239 = vpack.c.b16 %v2231, %v2230
    %2248 = vmatprep.subr.bf16.mxu0 0
    %2249 = vmatpush1.bf16.msra.mxu0 %v2239
    %2250 = vmatprep.subr.bf16.mxu0 0
    %2251 = vmatpush1.bf16.msra.mxu0 %v2238
    %2252 = vmatprep.subr.bf16.mxu0 0
    %2253 = vmatpush1.bf16.msra.mxu0 %v2237
    %2254 = vmatprep.subr.bf16.mxu0 0
    %2255 = vmatpush1.bf16.msra.mxu0 %v2236
    %2256 = vmatprep.subr.bf16.mxu0 0
    %2257 = vmatpush1.bf16.msra.mxu0 %v2235
    %2258 = vmatprep.subr.bf16.mxu0 0
    %2259 = vmatpush1.bf16.msra.mxu0 %v2234
    %2260 = vmatprep.subr.bf16.mxu0 0
    %2261 = vmatpush1.bf16.msra.mxu0 %v2233
    %2262 = vmatprep.subr.bf16.mxu0 0
    %2263 = vmatpush1.bf16.msra.mxu0 %v2232
    %2264 = vmatprep.subr.bf16.mxu0 0
    %2265 = vmatpush2.bf16.msra.mxu0 0
    %2266 = vmatprep.subr.bf16.mxu0 0
    %2267 = vmatpush2.bf16.msra.mxu0 0
    %2268 = vmatprep.subr.bf16.mxu0 0
    %2269 = vmatpush2.bf16.msra.mxu0 0
    %2270 = vmatprep.subr.bf16.mxu0 0
    %2271 = vmatpush2.bf16.msra.mxu0 0
    %2272 = vmatprep.subr.bf16.mxu0 0
    %2273 = vmatpush2.bf16.msra.mxu0 0
    %2274 = vmatprep.subr.bf16.mxu0 0
    %2275 = vmatpush2.bf16.msra.mxu0 0
    %2276 = vmatprep.subr.bf16.mxu0 0
    %2277 = vmatpush2.bf16.msra.mxu0 0
    %2278 = vmatprep.subr.bf16.mxu0 0
    %2279 = vmatpush2.bf16.msra.mxu0 0
    %2280 = vmatprep.mubr.bf16.mxu0 0
    %2281 = vmatmul.mubr.bf16.gmra.mxu0 %v2181
    %v2282 = vpop.f32.mrf.mxu0
    %v2283 = vadd.f32 0.0, %v2282
    %v2284 = vpop.f32.mrf.mxu0
    %v2285 = vpop.f32.mrf.mxu0
    %v2286 = vadd.f32 0.0, %v2285
    %v2287 = vpop.f32.mrf.mxu0
    %2288 = vmatprep.mubr.bf16.mxu0 0
    %2289 = vmatmul.mubr.bf16.gmra.mxu0 %v2182
    %v2290 = vpop.f32.mrf.mxu0
    %v2291 = vadd.f32 0.0, %v2290
    %v2292 = vpop.f32.mrf.mxu0
    %v2293 = vpop.f32.mrf.mxu0
    %v2294 = vadd.f32 0.0, %v2293
    %v2295 = vpop.f32.mrf.mxu0
    %2296 = vdwg.mxu0
    %v2297 = vadd.f32 %v2167, %v2283
    %v2298 = vadd.f32 %v2170, %v2286
    %v2299 = vadd.f32 %v2175, %v2291
    %v2300 = vadd.f32 %v2178, %v2294
    %v2301 = vld [vmem:[%s9] sm:$0x1]
    %v2303 = vlaneseq
    %v2304 = vshrl.u32 %v2303, 7
    %v2305 = vsub.s32 0, %v2304
    %v2306 = vrot.slane %v2301, %v2305
    %v2308 = vadd.f32 %v2297, %v2306
    %v2309 = vadd.f32 %v2298, %v2306
    %v2310 = vadd.f32 %v2299, %v2306
    %v2311 = vadd.f32 %v2300, %v2306
    %v2312 = vadd.f32 %v1872, %v2308
    %v2313 = vadd.f32 %v1873, %v2309
    %v2314 = vadd.f32 %v1874, %v2310
    %v2315 = vadd.f32 %v1875, %v2311
    %2316 = vadd.xlane.f32.xlu0 %v2312
    %v2317 = vpop.xlane.xlu0 %2316
    %2318 = vadd.xlane.f32.xlu0 %v2313
    %v2319 = vpop.xlane.xlu0 %2318
    %2320 = vadd.xlane.f32.xlu0 %v2314
    %v2321 = vpop.xlane.xlu0 %2320
    %2322 = vadd.xlane.f32.xlu0 %v2315
    %v2323 = vpop.xlane.xlu0 %2322
    %v2324 = vrcp.pop 128.0
    %v2325 = vmul.f32 %v2317, %v2324
    %v2326 = vmul.f32 %v2319, %v2324
    %v2327 = vmul.f32 %v2321, %v2324
    %v2328 = vmul.f32 %v2323, %v2324
    %v2329 = vsub.f32 %v2312, %v2325
    %v2330 = vsub.f32 %v2313, %v2326
    %v2331 = vsub.f32 %v2314, %v2327
    %v2332 = vsub.f32 %v2315, %v2328
    %v2333 = vmul.f32 %v2329, %v2329
    %v2334 = vmul.f32 %v2330, %v2330
    %v2335 = vmul.f32 %v2331, %v2331
    %v2336 = vmul.f32 %v2332, %v2332
    %2337 = vadd.xlane.f32.xlu0 %v2333
    %v2338 = vpop.xlane.xlu0 %2337
    %2339 = vadd.xlane.f32.xlu0 %v2334
    %v2340 = vpop.xlane.xlu0 %2339
    %2341 = vadd.xlane.f32.xlu0 %v2335
    %v2342 = vpop.xlane.xlu0 %2341
    %2343 = vadd.xlane.f32.xlu0 %v2336
    %v2344 = vpop.xlane.xlu0 %2343
    %v2345 = vmul.f32 %v2338, %v2324
    %v2346 = vmul.f32 %v2340, %v2324
    %v2347 = vmul.f32 %v2342, %v2324
    %v2348 = vmul.f32 %v2344, %v2324
    %v2349 = vadd.f32 %v2345, 1e-05
    %v2350 = vadd.f32 %v2346, 1e-05
    %v2351 = vadd.f32 %v2347, 1e-05
    %v2352 = vadd.f32 %v2348, 1e-05
    %v2353 = vrsqrt.pop %v2349
    %v2354 = vrsqrt.pop %v2350
    %v2355 = vrsqrt.pop %v2351
    %v2356 = vrsqrt.pop %v2352
    %v2357 = vmul.f32 %v2329, %v2353
    %v2358 = vmul.f32 %v2330, %v2354
    %v2359 = vmul.f32 %v2331, %v2355
    %v2360 = vmul.f32 %v2332, %v2356
    %v2361 = vld [vmem:[%s10] sm:$0x1]
    %v2363 = vlaneseq
    %v2364 = vshrl.u32 %v2363, 7
    %v2365 = vsub.s32 0, %v2364
    %v2366 = vrot.slane %v2361, %v2365
    %v2368 = vmul.f32 %v2357, %v2366
    %v2369 = vmul.f32 %v2358, %v2366
    %v2370 = vmul.f32 %v2359, %v2366
    %v2371 = vmul.f32 %v2360, %v2366
    %v2372 = vld [vmem:[%s11] sm:$0x1]
    %v2374 = vlaneseq
    %v2375 = vshrl.u32 %v2374, 7
    %v2376 = vsub.s32 0, %v2375
    %v2377 = vrot.slane %v2372, %v2376
    %v2379 = vadd.f32 %v2368, %v2377
    %v2380 = vadd.f32 %v2369, %v2377
    %v2381 = vadd.f32 %v2370, %v2377
    %v2382 = vadd.f32 %v2371, %v2377
    %2383 = vst [vmem:[#allocation13] sm:$0xff] %v2379
    %2384 = vst [vmem:[#allocation13 + $0x8] sm:$0xff] %v2380
    %2385 = vst [vmem:[#allocation13 + $0x10] sm:$0xff] %v2381
    %2386 = vst [vmem:[#allocation13 + $0x18] sm:$0xff] %v2382
    // Predicated region
    $region86: #{_lambda_.1} parent=1 // pred_check
      _
    $region87: #{_lambda_.1} parent=1 // pred_check_branch
      %2388 = sbr.rel (0) target = $region89
    $region88: #{_lambda_.1} parent=1 // pred_region
      %s2390 = ssub.s32 512, 512
      %2391 = vsyncadd [#allocation4], %s2390
      %s2392 = sshll.u32 [#allocation13], 4
      %s2393 = int_to_ptr.vmem [resolvable:$true] %s2392
      %2398 = dma.vmem_to_hbm [thread:$0]  %s2393, 512, %s15, [#allocation4], 128, 128, 8
    $region89: #{_lambda_.1} parent=1 // pred_fallthru
      _
    // Predicated region
    $region90: #{_lambda_.1} parent=1 // pred_check
      _
    $region91: #{_lambda_.1} parent=1 // pred_check_branch
      %2400 = sbr.rel (0) target = $region93
    $region92: #{_lambda_.1} parent=1 // pred_region
      %2401 = dma.done [#allocation4], 512
    $region93: #{_lambda_.1} parent=1 // pred_fallthru
      _
    %2402 = vsyncpa [#allocation3], 1
    %2403 = vsyncpa [#allocation6], 1
    %2404 = vsyncpa [#allocation9], 1
    %2405 = vsyncpa [#allocation12], 1
    %2406 = vsyncpa [#allocation4], 1

</llo_original>
